<compile_context>
chip_gen: v7x
topology: tpu7x:2x2x1
jax: 0.10.0
libtpu: 0.0.40
codegen_flags: <defaults>
</compile_context>

<pallas_src>
from functools import reduce

import jax
import jax.numpy as jnp
import numpy as np

from jax.experimental import pallas as pl
from jax.experimental.pallas import tpu as pltpu


# ---------------------------------------------------------------------------
# Kernel
# ---------------------------------------------------------------------------
def discriminator_kernel(x_ref,
                         w1_ref, b1_ref,
                         w2_ref, b2_ref,
                         w3_ref, b3_ref,
                         w4_ref, b4_ref,
                         o_ref):
    # x_ref: (TILE_B, numel_p) f32 -- cast to bf16 in-kernel (saves a separate
    # XLA cast pass + an extra HBM round-trip over x in the wrapper).
    x = x_ref[...].astype(jnp.bfloat16)

    # Layer 1: bf16 MXU matmul, f32 accumulate; LeakyReLU(0.2) on VPU in f32.
    h = jnp.dot(x, w1_ref[...], preferred_element_type=jnp.float32) + b1_ref[...]
    h = jnp.maximum(h, 0.2 * h)

    # Layer 2.
    h = jnp.dot(h.astype(jnp.bfloat16), w2_ref[...],
                preferred_element_type=jnp.float32) + b2_ref[...]
    h = jnp.maximum(h, 0.2 * h)

    # Layer 3.
    h = jnp.dot(h.astype(jnp.bfloat16), w3_ref[...],
                preferred_element_type=jnp.float32) + b3_ref[...]
    h = jnp.maximum(h, 0.2 * h)

    # Layer 4 (out_features=1): VPU multiply against the broadcast w4 row plus
    # a lane-axis reduction (XLU) instead of a degenerate 1-column MXU matmul.
    logits = jnp.sum(h * w4_ref[...], axis=-1, keepdims=True) + b4_ref[...]

    # Sigmoid: exp on EUP, approximate reciprocal on EUP (off the VPU path).
    o_ref[...] = pl.reciprocal(1.0 + jnp.exp(-logits), approx=True)


# ---------------------------------------------------------------------------
# Tiling / VMEM helpers
# ---------------------------------------------------------------------------
def _round_up(v, m):
    return ((v + m - 1) // m) * m


def _vmem_capacity_bytes():
    """Physical VMEM per TensorCore; conservative 64 MiB (v7x) fallback."""
    try:
        return int(pltpu.get_tpu_info().vmem_capacity_bytes)
    except Exception:
        return 64 << 20


def _weight_vmem_bytes(numel_p):
    # Resident weights/biases. BlockSpec pipelining allocates two buffers even
    # though the constant index_map means they only DMA once; single-buffering
    # them (pipeline_mode=pl.Buffered(1)) would halve this footprint -- left at
    # the default 2-buffer setting here for portability.
    w_bf16 = numel_p * 256 + 256 * 512 + 512 * 1024
    small_f32 = 256 + 512 + 1024 + 1024 + 1
    return 2 * (w_bf16 * 2 + small_f32 * 4)


def _tile_vmem_bytes(tb, numel_p):
    x_tile = 2 * tb * numel_p * 4        # f32 x tile, double-buffered
    acts = 2 * tb * 1024 * 4             # f32 activation temporaries (rough)
    out = 2 * tb * 4                     # (tb, 1) f32 output, double-buffered
    return x_tile + acts + out


def _pick_tile_b(B, numel_p, max_tile_b, vmem_budget):
    """Largest batch tile fitting the VMEM budget, then resized to the batch
    so ragged batches don't pay up to tile_b-1 rows of zero-padding waste."""
    tb = _round_up(min(max_tile_b, B), 8)
    while tb > 8 and (_weight_vmem_bytes(numel_p)
                      + _tile_vmem_bytes(tb, numel_p)) > vmem_budget:
        tb = max(8, _round_up(tb // 2, 8))
    # TODO(synk): large-numel path -- if w1 alone overflows the VMEM budget,
    # split layer 1 over a K-reduction grid axis ("arbitrary", f32 accumulator)
    # instead of only shrinking the batch tile.
    n_tiles = -(-B // tb)
    tb = _round_up(-(-B // n_tiles), 8)
    return tb


# ---------------------------------------------------------------------------
# Parameter prep (one-time) and forward wrapper
# ---------------------------------------------------------------------------
def prepare_params(params):
    """One-time packing: large weights stored in bf16 (so training loops don't
    re-cast every call), w1's K dim zero-padded to a multiple of 128, final
    layer kept f32 as a (1, 1024) row for the VPU path."""
    (w1, b1), (w2, b2), (w3, b3), (w4, b4) = params
    numel = w1.shape[0]
    numel_p = _round_up(numel, 128)
    w1b = w1.astype(jnp.bfloat16)
    if numel_p != numel:
        w1b = jnp.pad(w1b, ((0, numel_p - numel), (0, 0)))
    return {
        "numel": numel,
        "numel_p": numel_p,
        "w1": w1b,
        "b1": jnp.asarray(b1, jnp.float32).reshape(1, 256),
        "w2": w2.astype(jnp.bfloat16),
        "b2": jnp.asarray(b2, jnp.float32).reshape(1, 512),
        "w3": w3.astype(jnp.bfloat16),
        "b3": jnp.asarray(b3, jnp.float32).reshape(1, 1024),
        "w4": jnp.asarray(w4, jnp.float32).reshape(1, 1024),
        "b4": jnp.asarray(b4, jnp.float32).reshape(1, 1),
    }


def discriminator_forward(x, prepared):
    """x: (B, C, H, W) float32 (NCHW, as in PyTorch). Returns (B, 1) float32."""
    B = x.shape[0]
    numel = prepared["numel"]
    numel_p = prepared["numel_p"]
    x_flat = x.reshape(B, -1).astype(jnp.float32)
    assert x_flat.shape[1] == numel, (x_flat.shape, numel)

    # VMEM-aware tile sizing: big tiles on v5e/v6e (128 MiB VMEM); budgeted
    # <=512-row tiles on v7x / unknown (64 MiB VMEM, >=2 grid steps at large B
    # keeps both v7x TensorCores busy under "parallel").
    cap = _vmem_capacity_bytes()
    if cap >= (100 << 20):                 # v5e / v6e
        max_tile_b, vmem_budget, vmem_limit = 1024, 80 << 20, 96 << 20
    else:                                  # v7x (or unknown -> conservative)
        max_tile_b, vmem_budget, vmem_limit = 512, 40 << 20, 48 << 20

    tb = _pick_tile_b(B, numel_p, max_tile_b, vmem_budget)
    Bp = _round_up(B, tb)
    if Bp != B or numel_p != numel:
        x_flat = jnp.pad(x_flat, ((0, Bp - B), (0, numel_p - numel)))
    grid = (Bp // tb,)

    def resident(shape):
        # Constant index_map -> same block every grid step -> weights DMA once
        # and stay VMEM-resident for the whole batch.
        return pl.BlockSpec(shape, lambda i: (0, 0))

    in_specs = [
        pl.BlockSpec((tb, numel_p), lambda i: (i, 0)),        # x tile (f32)
        resident((numel_p, 256)), resident((1, 256)),         # w1, b1
        resident((256, 512)),     resident((1, 512)),         # w2, b2
        resident((512, 1024)),    resident((1, 1024)),        # w3, b3
        resident((1, 1024)),      resident((1, 1)),           # w4 row, b4
    ]
    out_specs = pl.BlockSpec((tb, 1), lambda i: (i, 0))

    flops = 2 * Bp * (numel_p * 256 + 256 * 512 + 512 * 1024 + 1024)
    weight_bytes = (int(prepared["w1"].size) + int(prepared["w2"].size)
                    + int(prepared["w3"].size)) * 2 \
        + (int(prepared["w4"].size) + 256 + 512 + 1024 + 1) * 4
    bytes_accessed = weight_bytes + int(x_flat.size) * 4 + Bp * 4
    cost = pl.CostEstimate(flops=flops, transcendentals=Bp,
                           bytes_accessed=bytes_accessed)

    out = pl.pallas_call(
        discriminator_kernel,
        out_shape=jax.ShapeDtypeStruct((Bp, 1), jnp.float32),
        grid=grid,
        in_specs=in_specs,
        out_specs=out_specs,
        compiler_params=pltpu.CompilerParams(
            dimension_semantics=("parallel",),
            vmem_limit_bytes=vmem_limit,
        ),
        cost_estimate=cost,
    )(x_flat, prepared["w1"], prepared["b1"], prepared["w2"], prepared["b2"],
      prepared["w3"], prepared["b3"], prepared["w4"], prepared["b4"])

    return out[:B]


# ---------------------------------------------------------------------------
# Init + pure-JAX reference (mirrors bf16-weight / f32-accumulate numerics)
# ---------------------------------------------------------------------------
def init_params(key, numel):
    """Kaiming-normal (fan_in, gain=sqrt(2)) weights, zero biases.

    Weights are stored as (in_features, out_features), i.e. the transpose of
    PyTorch's nn.Linear weight."""
    dims = [numel, 256, 512, 1024, 1]
    params = []
    for i in range(4):
        key, sub = jax.random.split(key)
        fan_in, fan_out = dims[i], dims[i + 1]
        std = float(np.sqrt(2.0 / fan_in))
        w = jax.random.normal(sub, (fan_in, fan_out), dtype=jnp.float32) * std
        b = jnp.zeros((1, fan_out), dtype=jnp.float32)
        params.append((w, b))
    return params


def reference_forward(x, params):
    (w1, b1), (w2, b2), (w3, b3), (w4, b4) = params
    h = x.reshape(x.shape[0], -1).astype(jnp.bfloat16)
    h = jnp.dot(h, w1.astype(jnp.bfloat16),
                preferred_element_type=jnp.float32) + b1
    h = jnp.maximum(h, 0.2 * h)
    h = jnp.dot(h.astype(jnp.bfloat16), w2.astype(jnp.bfloat16),
                preferred_element_type=jnp.float32) + b2
    h = jnp.maximum(h, 0.2 * h)
    h = jnp.dot(h.astype(jnp.bfloat16), w3.astype(jnp.bfloat16),
                preferred_element_type=jnp.float32) + b3
    h = jnp.maximum(h, 0.2 * h)
    logits = h @ w4 + b4.reshape(1, 1)
    return jax.nn.sigmoid(logits)


if __name__ == "__main__":
    # Small shapes consistent with the module: img_size=(C,H,W)=(4,16,16).
    img_size = (4, 16, 16)
    numel = reduce(lambda a, b: a * b, img_size)   # 1024
    batch = 2

    key = jax.random.PRNGKey(0)
    key, xk = jax.random.split(key)
    x = jax.random.normal(xk, (batch,) + img_size, dtype=jnp.float32)

    params = init_params(key, numel)
    prepared = prepare_params(params)      # one-time bf16 cast / packing

    # Small batch (single 8-row tile after sublane rounding).
    out = jax.block_until_ready(discriminator_forward(x, prepared))
    assert out.shape == (batch, 1), out.shape
    ref = reference_forward(x, params)
    np.testing.assert_allclose(np.asarray(out), np.asarray(ref),
                               rtol=5e-3, atol=2e-3)

    # Ragged larger batch exercising the grid: adaptive tiling avoids padding
    # 600 -> a full max-size tile multiple.
    key, xk2 = jax.random.split(key)
    x_big = jax.random.normal(xk2, (600,) + img_size, dtype=jnp.float32)
    out_big = jax.block_until_ready(discriminator_forward(x_big, prepared))
    assert out_big.shape == (600, 1), out_big.shape
    ref_big = reference_forward(x_big, params)
    np.testing.assert_allclose(np.asarray(out_big), np.asarray(ref_big),
                               rtol=5e-3, atol=2e-3)

    print("KERNEL_OK")
</pallas_src>

<mosaic_0001>
module attributes {stable_mosaic.version = 11 : i64} {
  func.func @discriminator_kernel(%arg0: i32, %arg1: memref<8x1024xf32, #tpu.memory_space<vmem>>, %arg2: memref<1024x256xbf16, #tpu.memory_space<vmem>>, %arg3: memref<1x256xf32, #tpu.memory_space<vmem>>, %arg4: memref<256x512xbf16, #tpu.memory_space<vmem>>, %arg5: memref<1x512xf32, #tpu.memory_space<vmem>>, %arg6: memref<512x1024xbf16, #tpu.memory_space<vmem>>, %arg7: memref<1x1024xf32, #tpu.memory_space<vmem>>, %arg8: memref<1x1024xf32, #tpu.memory_space<vmem>>, %arg9: memref<1x1xf32, #tpu.memory_space<vmem>>, %arg10: memref<8x1xf32, #tpu.memory_space<vmem>>) attributes {dimension_semantics = [#tpu.dimension_semantics<parallel>], iteration_bounds = array<i64: 1>, scalar_prefetch = 0 : i64, scratch_operands = 0 : i64, tpu.core_type = #tpu.core_type<tc>, window_params = [{transform_indices = @transform_0, window_bounds = array<i64: 8, 1024>}, {pipeline_mode = #tpu.pipeline_mode<synchronous>, transform_indices = @transform_1, window_bounds = array<i64: 1024, 256>}, {pipeline_mode = #tpu.pipeline_mode<synchronous>, transform_indices = @transform_2, window_bounds = array<i64: 1, 256>}, {pipeline_mode = #tpu.pipeline_mode<synchronous>, transform_indices = @transform_3, window_bounds = array<i64: 256, 512>}, {pipeline_mode = #tpu.pipeline_mode<synchronous>, transform_indices = @transform_4, window_bounds = array<i64: 1, 512>}, {pipeline_mode = #tpu.pipeline_mode<synchronous>, transform_indices = @transform_5, window_bounds = array<i64: 512, 1024>}, {pipeline_mode = #tpu.pipeline_mode<synchronous>, transform_indices = @transform_6, window_bounds = array<i64: 1, 1024>}, {pipeline_mode = #tpu.pipeline_mode<synchronous>, transform_indices = @transform_7, window_bounds = array<i64: 1, 1024>}, {pipeline_mode = #tpu.pipeline_mode<synchronous>, transform_indices = @transform_8, window_bounds = array<i64: 1, 1>}, {transform_indices = @transform_9, window_bounds = array<i64: 8, 1>}]} {
    %c0 = arith.constant 0 : index
    %c0_0 = arith.constant 0 : index
    %0 = vector.load %arg1[%c0, %c0_0] : memref<8x1024xf32, #tpu.memory_space<vmem>>, vector<8x1024xf32>
    %1 = arith.truncf %0 : vector<8x1024xf32> to vector<8x1024xbf16>
    %c0_1 = arith.constant 0 : index
    %c0_2 = arith.constant 0 : index
    %2 = vector.load %arg2[%c0_1, %c0_2] : memref<1024x256xbf16, #tpu.memory_space<vmem>>, vector<1024x256xbf16>
    %cst = arith.constant dense<0.000000e+00> : vector<8x256xf32>
    %3 = tpu.matmul %1, %2, %cst {dimension_numbers = #tpu.dot_dimension_numbers<[1], [0], [0], [1], [0, 0, 1, 1], [], []>} : vector<8x1024xbf16>, vector<1024x256xbf16>, vector<8x256xf32> -> vector<8x256xf32>
    %c0_3 = arith.constant 0 : index
    %c0_4 = arith.constant 0 : index
    %4 = vector.load %arg3[%c0_3, %c0_4] : memref<1x256xf32, #tpu.memory_space<vmem>>, vector<1x256xf32>
    %5 = vector.broadcast %4 : vector<1x256xf32> to vector<8x256xf32>
    %6 = arith.addf %3, %5 : vector<8x256xf32>
    %cst_5 = arith.constant 2.000000e-01 : f32
    %7 = vector.broadcast %cst_5 : f32 to vector<8x256xf32>
    %8 = arith.mulf %7, %6 : vector<8x256xf32>
    %9 = arith.maximumf %6, %8 : vector<8x256xf32>
    %10 = arith.truncf %9 : vector<8x256xf32> to vector<8x256xbf16>
    %c0_6 = arith.constant 0 : index
    %c0_7 = arith.constant 0 : index
    %11 = vector.load %arg4[%c0_6, %c0_7] : memref<256x512xbf16, #tpu.memory_space<vmem>>, vector<256x512xbf16>
    %cst_8 = arith.constant dense<0.000000e+00> : vector<8x512xf32>
    %12 = tpu.matmul %10, %11, %cst_8 {dimension_numbers = #tpu.dot_dimension_numbers<[1], [0], [0], [1], [0, 0, 1, 1], [], []>} : vector<8x256xbf16>, vector<256x512xbf16>, vector<8x512xf32> -> vector<8x512xf32>
    %c0_9 = arith.constant 0 : index
    %c0_10 = arith.constant 0 : index
    %13 = vector.load %arg5[%c0_9, %c0_10] : memref<1x512xf32, #tpu.memory_space<vmem>>, vector<1x512xf32>
    %14 = vector.broadcast %13 : vector<1x512xf32> to vector<8x512xf32>
    %15 = arith.addf %12, %14 : vector<8x512xf32>
    %cst_11 = arith.constant 2.000000e-01 : f32
    %16 = vector.broadcast %cst_11 : f32 to vector<8x512xf32>
    %17 = arith.mulf %16, %15 : vector<8x512xf32>
    %18 = arith.maximumf %15, %17 : vector<8x512xf32>
    %19 = arith.truncf %18 : vector<8x512xf32> to vector<8x512xbf16>
    %c0_12 = arith.constant 0 : index
    %c0_13 = arith.constant 0 : index
    %20 = vector.load %arg6[%c0_12, %c0_13] : memref<512x1024xbf16, #tpu.memory_space<vmem>>, vector<512x1024xbf16>
    %cst_14 = arith.constant dense<0.000000e+00> : vector<8x1024xf32>
    %21 = tpu.matmul %19, %20, %cst_14 {dimension_numbers = #tpu.dot_dimension_numbers<[1], [0], [0], [1], [0, 0, 1, 1], [], []>} : vector<8x512xbf16>, vector<512x1024xbf16>, vector<8x1024xf32> -> vector<8x1024xf32>
    %c0_15 = arith.constant 0 : index
    %c0_16 = arith.constant 0 : index
    %22 = vector.load %arg7[%c0_15, %c0_16] : memref<1x1024xf32, #tpu.memory_space<vmem>>, vector<1x1024xf32>
    %23 = vector.broadcast %22 : vector<1x1024xf32> to vector<8x1024xf32>
    %24 = arith.addf %21, %23 : vector<8x1024xf32>
    %cst_17 = arith.constant 2.000000e-01 : f32
    %25 = vector.broadcast %cst_17 : f32 to vector<8x1024xf32>
    %26 = arith.mulf %25, %24 : vector<8x1024xf32>
    %27 = arith.maximumf %24, %26 : vector<8x1024xf32>
    %c0_18 = arith.constant 0 : index
    %c0_19 = arith.constant 0 : index
    %28 = vector.load %arg8[%c0_18, %c0_19] : memref<1x1024xf32, #tpu.memory_space<vmem>>, vector<1x1024xf32>
    %29 = vector.broadcast %28 : vector<1x1024xf32> to vector<8x1024xf32>
    %30 = arith.mulf %27, %29 : vector<8x1024xf32>
    %cst_20 = arith.constant dense<0.000000e+00> : vector<8xf32>
    %31 = vector.multi_reduction <add>, %30, %cst_20 [1] : vector<8x1024xf32> to vector<8xf32>
    %32 = vector.shape_cast %31 : vector<8xf32> to vector<8x1xf32>
    %c0_21 = arith.constant 0 : index
    %c0_22 = arith.constant 0 : index
    %33 = vector.load %arg9[%c0_21, %c0_22] : memref<1x1xf32, #tpu.memory_space<vmem>>, vector<1x1xf32>
    %34 = vector.broadcast %33 : vector<1x1xf32> to vector<8x1xf32>
    %35 = arith.addf %32, %34 : vector<8x1xf32>
    %cst_23 = arith.constant 0.000000e+00 : f32
    %36 = vector.broadcast %cst_23 : f32 to vector<8x1xf32>
    %37 = arith.subf %36, %35 : vector<8x1xf32>
    %38 = math.exp %37 : vector<8x1xf32>
    %cst_24 = arith.constant 1.000000e+00 : f32
    %39 = vector.broadcast %cst_24 : f32 to vector<8x1xf32>
    %40 = arith.addf %39, %38 : vector<8x1xf32>
    %41 = tpu.reciprocal %40 {approx = true} : vector<8x1xf32> -> vector<8x1xf32>
    %c0_25 = arith.constant 0 : index
    %c0_26 = arith.constant 0 : index
    %42 = vector.load %arg10[%c0_25, %c0_26] : memref<8x1xf32, #tpu.memory_space<vmem>>, vector<8x1xf32>
    tpu.vector_store %arg10[%c0_25, %c0_26], %41 {strides = array<i32>} : memref<8x1xf32, #tpu.memory_space<vmem>>, vector<8x1xf32>,
    return
  }
  func.func @transform_0(%arg0: i32) -> (i32, i32) {
    %c0_i32 = arith.constant 0 : i32
    %c0_i32_0 = arith.constant 0 : i32
    return %arg0, %c0_i32 : i32, i32
  }
  func.func @transform_1(%arg0: i32) -> (i32, i32) {
    %c0_i32 = arith.constant 0 : i32
    %c0_i32_0 = arith.constant 0 : i32
    %c0_i32_1 = arith.constant 0 : i32
    return %c0_i32, %c0_i32_0 : i32, i32
  }
  func.func @transform_2(%arg0: i32) -> (i32, i32) {
    %c0_i32 = arith.constant 0 : i32
    %c0_i32_0 = arith.constant 0 : i32
    %c0_i32_1 = arith.constant 0 : i32
    return %c0_i32, %c0_i32_0 : i32, i32
  }
  func.func @transform_3(%arg0: i32) -> (i32, i32) {
    %c0_i32 = arith.constant 0 : i32
    %c0_i32_0 = arith.constant 0 : i32
    %c0_i32_1 = arith.constant 0 : i32
    return %c0_i32, %c0_i32_0 : i32, i32
  }
  func.func @transform_4(%arg0: i32) -> (i32, i32) {
    %c0_i32 = arith.constant 0 : i32
    %c0_i32_0 = arith.constant 0 : i32
    %c0_i32_1 = arith.constant 0 : i32
    return %c0_i32, %c0_i32_0 : i32, i32
  }
  func.func @transform_5(%arg0: i32) -> (i32, i32) {
    %c0_i32 = arith.constant 0 : i32
    %c0_i32_0 = arith.constant 0 : i32
    %c0_i32_1 = arith.constant 0 : i32
    return %c0_i32, %c0_i32_0 : i32, i32
  }
  func.func @transform_6(%arg0: i32) -> (i32, i32) {
    %c0_i32 = arith.constant 0 : i32
    %c0_i32_0 = arith.constant 0 : i32
    %c0_i32_1 = arith.constant 0 : i32
    return %c0_i32, %c0_i32_0 : i32, i32
  }
  func.func @transform_7(%arg0: i32) -> (i32, i32) {
    %c0_i32 = arith.constant 0 : i32
    %c0_i32_0 = arith.constant 0 : i32
    %c0_i32_1 = arith.constant 0 : i32
    return %c0_i32, %c0_i32_0 : i32, i32
  }
  func.func @transform_8(%arg0: i32) -> (i32, i32) {
    %c0_i32 = arith.constant 0 : i32
    %c0_i32_0 = arith.constant 0 : i32
    %c0_i32_1 = arith.constant 0 : i32
    return %c0_i32, %c0_i32_0 : i32, i32
  }
  func.func @transform_9(%arg0: i32) -> (i32, i32) {
    %c0_i32 = arith.constant 0 : i32
    %c0_i32_0 = arith.constant 0 : i32
    return %arg0, %c0_i32 : i32, i32
  }
}

</mosaic_0001>

<llo_original>
// kernel: tpu_custom_call.1
$region0: #{tpu_custom_call.1}
  #allocation0 [shape = 'u32[]', space=smem, size = 0x4, offset = 0x4, fixed_abs, tag = 'smem constant byte address 0x4 - core index']
  #allocation1 [shape = 'u32[144,128]{1,0:T(1,128)}', space=vmem, size = 0x12000, scoped, tag = 'internal scratch']
  #allocation2 [shape = 'f32[1,1]{1,0:T(1,128)S(1)}', space=vmem, size = 0x200, scoped, tag = 'scoped memory for tpu_custom_call.1']
  %s0 = inlined_call_operand.hbm [shape: f32[8,1024], index: 0, kind: input, shape index: {}]
  %s1 = inlined_call_operand.hbm [shape: bf16[1024,256], index: 1, kind: input, shape index: {}]
  %s2 = inlined_call_operand.vmem [shape: f32[1,256], index: 2, kind: input, shape index: {}]
  %s3 = inlined_call_operand.hbm [shape: bf16[256,512], index: 3, kind: input, shape index: {}]
  %s4 = inlined_call_operand.hbm [shape: f32[1,512], index: 4, kind: input, shape index: {}]
  %s5 = inlined_call_operand.hbm [shape: bf16[512,1024], index: 5, kind: input, shape index: {}]
  %s6 = inlined_call_operand.vmem [shape: f32[1,1024], index: 6, kind: input, shape index: {}]
  %s7 = inlined_call_operand.vmem [shape: f32[1,1024], index: 7, kind: input, shape index: {}]
  %s8 = inlined_call_operand.<no memory space> [shape: f32[1,1], index: 8, kind: input, shape index: {}]
  %s9 = inlined_call_operand.vmem [shape: f32[8,1], index: 9, kind: output, shape index: {}]
  %s10 = sld [smem:[#allocation0]]
  $region66: #{tpu_custom_call.1} parent=0
    _
  %s12 = ssub.s32 1, %s10
  %s13 = scalar_select 0, %s12, %s10
  %v14 = vstv %s8
  %15 = vst [vmem:[#allocation2] sm:$0x1] %v14
  $region1: #{tpu_custom_call.1} parent=0
    #allocation3 [shape = 'u8[32768]{0}', space=vmem, size = 0x8000, scoped, tag = 'input window, operand 0, single buffered']
    #allocation4 [shape = 's32[1]{0}', space=sflag, size = 0x4, scoped, tag = 'scoped memory for tpu_custom_call.1']
    #allocation5 [shape = 'u8[524288]{0}', space=vmem, size = 0x80000, scoped, tag = 'input window, operand 1, single buffered']
    #allocation6 [shape = 's32[1]{0}', space=sflag, size = 0x4, scoped, tag = 'scoped memory for tpu_custom_call.1']
    #allocation7 [shape = 'u8[262144]{0}', space=vmem, size = 0x40000, scoped, tag = 'input window, operand 3, single buffered']
    #allocation8 [shape = 'u8[2048]{0}', space=vmem, size = 0x800, scoped, tag = 'input window, operand 4, single buffered']
    #allocation9 [shape = 's32[1]{0}', space=sflag, size = 0x4, scoped, tag = 'scoped memory for tpu_custom_call.1']
    #allocation10 [shape = 'u8[1048576]{0}', space=vmem, size = 0x100000, scoped, tag = 'input window, operand 5, single buffered']
    %16 = vsyncpa [#allocation4], 0
    %17 = vsyncpa [#allocation6], 0
    %18 = vsyncpa [#allocation9], 0
    // Predicated region
    $region2: #{tpu_custom_call.1} parent=1 // pred_check
      _
    $region3: #{tpu_custom_call.1} parent=1 // pred_check_branch
      %20 = sbr.rel (0) target = $region5
    $region4: #{tpu_custom_call.1} parent=1 // pred_region
      %s22 = ssub.s32 1024, 1024
      %23 = vsyncadd [#allocation4], %s22
      %s25 = sshll.u32 [#allocation3], 4
      %s26 = int_to_ptr.vmem [resolvable:$true] %s25
      %28 = dma.hbm_to_vmem [thread:$0]  %s0, 1024, %s26, [#allocation4]
    $region5: #{tpu_custom_call.1} parent=1 // pred_fallthru
      _
    // Predicated region
    $region6: #{tpu_custom_call.1} parent=1 // pred_check
      _
    $region7: #{tpu_custom_call.1} parent=1 // pred_check_branch
      %30 = sbr.rel (0) target = $region9
    $region8: #{tpu_custom_call.1} parent=1 // pred_region
      %s32 = ssub.s32 16384, 16384
      %33 = vsyncadd [#allocation6], %s32
      %s34 = sshll.u32 [#allocation5], 4
      %s35 = int_to_ptr.vmem [resolvable:$true] %s34
      %40 = dma.hbm_to_vmem [thread:$0]  %s1, 16384, %s35, [#allocation6], 128, 128, 8
    $region9: #{tpu_custom_call.1} parent=1 // pred_fallthru
      _
    // Predicated region
    $region10: #{tpu_custom_call.1} parent=1 // pred_check
      _
    $region11: #{tpu_custom_call.1} parent=1 // pred_check_branch
      %42 = sbr.rel (0) target = $region13
    $region12: #{tpu_custom_call.1} parent=1 // pred_region
      _
    $region13: #{tpu_custom_call.1} parent=1 // pred_fallthru
      _
    // Predicated region
    $region14: #{tpu_custom_call.1} parent=1 // pred_check
      _
    $region15: #{tpu_custom_call.1} parent=1 // pred_check_branch
      %44 = sbr.rel (0) target = $region17
    $region16: #{tpu_custom_call.1} parent=1 // pred_region
      %s46 = ssub.s32 8192, 8192
      %47 = vsyncadd [#allocation6], %s46
      %s48 = sshll.u32 [#allocation7], 4
      %s49 = int_to_ptr.vmem [resolvable:$true] %s48
      %54 = dma.hbm_to_vmem [thread:$0]  %s3, 8192, %s49, [#allocation6], 256, 256, 16
    $region17: #{tpu_custom_call.1} parent=1 // pred_fallthru
      _
    // Predicated region
    $region18: #{tpu_custom_call.1} parent=1 // pred_check
      _
    $region19: #{tpu_custom_call.1} parent=1 // pred_check_branch
      %56 = sbr.rel (0) target = $region21
    $region20: #{tpu_custom_call.1} parent=1 // pred_region
      %s58 = ssub.s32 64, 64
      %59 = vsyncadd [#allocation9], %s58
      %s61 = sshll.u32 [#allocation8], 4
      %s62 = int_to_ptr.vmem [resolvable:$true] %s61
      %64 = dma.hbm_to_vmem [thread:$0]  %s4, 64, %s62, [#allocation9]
    $region21: #{tpu_custom_call.1} parent=1 // pred_fallthru
      _
    // Predicated region
    $region22: #{tpu_custom_call.1} parent=1 // pred_check
      _
    $region23: #{tpu_custom_call.1} parent=1 // pred_check_branch
      %66 = sbr.rel (0) target = $region25
    $region24: #{tpu_custom_call.1} parent=1 // pred_region
      %s68 = ssub.s32 32768, 32768
      %69 = vsyncadd [#allocation9], %s68
      %s70 = sshll.u32 [#allocation10], 4
      %s71 = int_to_ptr.vmem [resolvable:$true] %s70
      %76 = dma.hbm_to_vmem [thread:$0]  %s5, 32768, %s71, [#allocation9], 512, 512, 32
    $region25: #{tpu_custom_call.1} parent=1 // pred_fallthru
      _
    // Predicated region
    $region26: #{tpu_custom_call.1} parent=1 // pred_check
      _
    $region27: #{tpu_custom_call.1} parent=1 // pred_check_branch
      %78 = sbr.rel (0) target = $region29
    $region28: #{tpu_custom_call.1} parent=1 // pred_region
      _
    $region29: #{tpu_custom_call.1} parent=1 // pred_fallthru
      _
    // Predicated region
    $region30: #{tpu_custom_call.1} parent=1 // pred_check
      _
    $region31: #{tpu_custom_call.1} parent=1 // pred_check_branch
      %80 = sbr.rel (0) target = $region33
    $region32: #{tpu_custom_call.1} parent=1 // pred_region
      _
    $region33: #{tpu_custom_call.1} parent=1 // pred_fallthru
      _
    // Predicated region
    $region34: #{tpu_custom_call.1} parent=1 // pred_check
      _
    $region35: #{tpu_custom_call.1} parent=1 // pred_check_branch
      %82 = sbr.rel (0) target = $region37
    $region36: #{tpu_custom_call.1} parent=1 // pred_region
      _
    $region37: #{tpu_custom_call.1} parent=1 // pred_fallthru
      _
    // Predicated region
    $region38: #{tpu_custom_call.1} parent=1 // pred_check
      _
    $region39: #{tpu_custom_call.1} parent=1 // pred_check_branch
      %84 = sbr.rel (0) target = $region41
    $region40: #{tpu_custom_call.1} parent=1 // pred_region
      %85 = dma.done [#allocation4], 1024
    $region41: #{tpu_custom_call.1} parent=1 // pred_fallthru
      _
    // Predicated region
    $region42: #{tpu_custom_call.1} parent=1 // pred_check
      _
    $region43: #{tpu_custom_call.1} parent=1 // pred_check_branch
      %87 = sbr.rel (0) target = $region45
    $region44: #{tpu_custom_call.1} parent=1 // pred_region
      %88 = dma.done [#allocation6], 16384
    $region45: #{tpu_custom_call.1} parent=1 // pred_fallthru
      _
    // Predicated region
    $region46: #{tpu_custom_call.1} parent=1 // pred_check
      _
    $region47: #{tpu_custom_call.1} parent=1 // pred_check_branch
      %90 = sbr.rel (0) target = $region49
    $region48: #{tpu_custom_call.1} parent=1 // pred_region
      %91 = dma.done [#allocation6], 8192
    $region49: #{tpu_custom_call.1} parent=1 // pred_fallthru
      _
    // Predicated region
    $region50: #{tpu_custom_call.1} parent=1 // pred_check
      _
    $region51: #{tpu_custom_call.1} parent=1 // pred_check_branch
      %93 = sbr.rel (0) target = $region53
    $region52: #{tpu_custom_call.1} parent=1 // pred_region
      %94 = dma.done [#allocation9], 64
    $region53: #{tpu_custom_call.1} parent=1 // pred_fallthru
      _
    // Predicated region
    $region54: #{tpu_custom_call.1} parent=1 // pred_check
      _
    $region55: #{tpu_custom_call.1} parent=1 // pred_check_branch
      %96 = sbr.rel (0) target = $region57
    $region56: #{tpu_custom_call.1} parent=1 // pred_region
      %97 = dma.done [#allocation9], 32768
    $region57: #{tpu_custom_call.1} parent=1 // pred_fallthru
      _
    %v98 = vld [vmem:[#allocation3] sm:$0xff]
    %v99 = vld [vmem:[#allocation3 + $0x8] sm:$0xff]
    %v100 = vld [vmem:[#allocation3 + $0x10] sm:$0xff]
    %v101 = vld [vmem:[#allocation3 + $0x18] sm:$0xff]
    %v102 = vld [vmem:[#allocation3 + $0x20] sm:$0xff]
    %v103 = vld [vmem:[#allocation3 + $0x28] sm:$0xff]
    %v104 = vld [vmem:[#allocation3 + $0x30] sm:$0xff]
    %v105 = vld [vmem:[#allocation3 + $0x38] sm:$0xff]
    %v106 = vpack.c.bf16 %v98, %v98
    %v107 = vpack.c.bf16 %v99, %v99
    %v108 = vpack.c.bf16 %v100, %v100
    %v109 = vpack.c.bf16 %v101, %v101
    %v110 = vpack.c.bf16 %v102, %v102
    %v111 = vpack.c.bf16 %v103, %v103
    %v112 = vpack.c.bf16 %v104, %v104
    %v113 = vpack.c.bf16 %v105, %v105
    %v114 = vld [vmem:[#allocation5] sm:$0xff]
    %v115 = vld [vmem:[#allocation5 + $0x8] sm:$0xff]
    %v116 = vld [vmem:[#allocation5 + $0x10] sm:$0xff]
    %v117 = vld [vmem:[#allocation5 + $0x18] sm:$0xff]
    %v118 = vld [vmem:[#allocation5 + $0x20] sm:$0xff]
    %v119 = vld [vmem:[#allocation5 + $0x28] sm:$0xff]
    %v120 = vld [vmem:[#allocation5 + $0x30] sm:$0xff]
    %v121 = vld [vmem:[#allocation5 + $0x38] sm:$0xff]
    %v122 = vld [vmem:[#allocation5 + $0x40] sm:$0xff]
    %v123 = vld [vmem:[#allocation5 + $0x48] sm:$0xff]
    %v124 = vld [vmem:[#allocation5 + $0x50] sm:$0xff]
    %v125 = vld [vmem:[#allocation5 + $0x58] sm:$0xff]
    %v126 = vld [vmem:[#allocation5 + $0x60] sm:$0xff]
    %v127 = vld [vmem:[#allocation5 + $0x68] sm:$0xff]
    %v128 = vld [vmem:[#allocation5 + $0x70] sm:$0xff]
    %v129 = vld [vmem:[#allocation5 + $0x78] sm:$0xff]
    %v130 = vld [vmem:[#allocation5 + $0x80] sm:$0xff]
    %v131 = vld [vmem:[#allocation5 + $0x88] sm:$0xff]
    %v132 = vld [vmem:[#allocation5 + $0x90] sm:$0xff]
    %v133 = vld [vmem:[#allocation5 + $0x98] sm:$0xff]
    %v134 = vld [vmem:[#allocation5 + $0xa0] sm:$0xff]
    %v135 = vld [vmem:[#allocation5 + $0xa8] sm:$0xff]
    %v136 = vld [vmem:[#allocation5 + $0xb0] sm:$0xff]
    %v137 = vld [vmem:[#allocation5 + $0xb8] sm:$0xff]
    %v138 = vld [vmem:[#allocation5 + $0xc0] sm:$0xff]
    %v139 = vld [vmem:[#allocation5 + $0xc8] sm:$0xff]
    %v140 = vld [vmem:[#allocation5 + $0xd0] sm:$0xff]
    %v141 = vld [vmem:[#allocation5 + $0xd8] sm:$0xff]
    %v142 = vld [vmem:[#allocation5 + $0xe0] sm:$0xff]
    %v143 = vld [vmem:[#allocation5 + $0xe8] sm:$0xff]
    %v144 = vld [vmem:[#allocation5 + $0xf0] sm:$0xff]
    %v145 = vld [vmem:[#allocation5 + $0xf8] sm:$0xff]
    %v146 = vld [vmem:[#allocation5 + $0x100] sm:$0xff]
    %v147 = vld [vmem:[#allocation5 + $0x108] sm:$0xff]
    %v148 = vld [vmem:[#allocation5 + $0x110] sm:$0xff]
    %v149 = vld [vmem:[#allocation5 + $0x118] sm:$0xff]
    %v150 = vld [vmem:[#allocation5 + $0x120] sm:$0xff]
    %v151 = vld [vmem:[#allocation5 + $0x128] sm:$0xff]
    %v152 = vld [vmem:[#allocation5 + $0x130] sm:$0xff]
    %v153 = vld [vmem:[#allocation5 + $0x138] sm:$0xff]
    %v154 = vld [vmem:[#allocation5 + $0x140] sm:$0xff]
    %v155 = vld [vmem:[#allocation5 + $0x148] sm:$0xff]
    %v156 = vld [vmem:[#allocation5 + $0x150] sm:$0xff]
    %v157 = vld [vmem:[#allocation5 + $0x158] sm:$0xff]
    %v158 = vld [vmem:[#allocation5 + $0x160] sm:$0xff]
    %v159 = vld [vmem:[#allocation5 + $0x168] sm:$0xff]
    %v160 = vld [vmem:[#allocation5 + $0x170] sm:$0xff]
    %v161 = vld [vmem:[#allocation5 + $0x178] sm:$0xff]
    %v162 = vld [vmem:[#allocation5 + $0x180] sm:$0xff]
    %v163 = vld [vmem:[#allocation5 + $0x188] sm:$0xff]
    %v164 = vld [vmem:[#allocation5 + $0x190] sm:$0xff]
    %v165 = vld [vmem:[#allocation5 + $0x198] sm:$0xff]
    %v166 = vld [vmem:[#allocation5 + $0x1a0] sm:$0xff]
    %v167 = vld [vmem:[#allocation5 + $0x1a8] sm:$0xff]
    %v168 = vld [vmem:[#allocation5 + $0x1b0] sm:$0xff]
    %v169 = vld [vmem:[#allocation5 + $0x1b8] sm:$0xff]
    %v170 = vld [vmem:[#allocation5 + $0x1c0] sm:$0xff]
    %v171 = vld [vmem:[#allocation5 + $0x1c8] sm:$0xff]
    %v172 = vld [vmem:[#allocation5 + $0x1d0] sm:$0xff]
    %v173 = vld [vmem:[#allocation5 + $0x1d8] sm:$0xff]
    %v174 = vld [vmem:[#allocation5 + $0x1e0] sm:$0xff]
    %v175 = vld [vmem:[#allocation5 + $0x1e8] sm:$0xff]
    %v176 = vld [vmem:[#allocation5 + $0x1f0] sm:$0xff]
    %v177 = vld [vmem:[#allocation5 + $0x1f8] sm:$0xff]
    %v178 = vld [vmem:[#allocation5 + $0x200] sm:$0xff]
    %v179 = vld [vmem:[#allocation5 + $0x208] sm:$0xff]
    %v180 = vld [vmem:[#allocation5 + $0x210] sm:$0xff]
    %v181 = vld [vmem:[#allocation5 + $0x218] sm:$0xff]
    %v182 = vld [vmem:[#allocation5 + $0x220] sm:$0xff]
    %v183 = vld [vmem:[#allocation5 + $0x228] sm:$0xff]
    %v184 = vld [vmem:[#allocation5 + $0x230] sm:$0xff]
    %v185 = vld [vmem:[#allocation5 + $0x238] sm:$0xff]
    %v186 = vld [vmem:[#allocation5 + $0x240] sm:$0xff]
    %v187 = vld [vmem:[#allocation5 + $0x248] sm:$0xff]
    %v188 = vld [vmem:[#allocation5 + $0x250] sm:$0xff]
    %v189 = vld [vmem:[#allocation5 + $0x258] sm:$0xff]
    %v190 = vld [vmem:[#allocation5 + $0x260] sm:$0xff]
    %v191 = vld [vmem:[#allocation5 + $0x268] sm:$0xff]
    %v192 = vld [vmem:[#allocation5 + $0x270] sm:$0xff]
    %v193 = vld [vmem:[#allocation5 + $0x278] sm:$0xff]
    %v194 = vld [vmem:[#allocation5 + $0x280] sm:$0xff]
    %v195 = vld [vmem:[#allocation5 + $0x288] sm:$0xff]
    %v196 = vld [vmem:[#allocation5 + $0x290] sm:$0xff]
    %v197 = vld [vmem:[#allocation5 + $0x298] sm:$0xff]
    %v198 = vld [vmem:[#allocation5 + $0x2a0] sm:$0xff]
    %v199 = vld [vmem:[#allocation5 + $0x2a8] sm:$0xff]
    %v200 = vld [vmem:[#allocation5 + $0x2b0] sm:$0xff]
    %v201 = vld [vmem:[#allocation5 + $0x2b8] sm:$0xff]
    %v202 = vld [vmem:[#allocation5 + $0x2c0] sm:$0xff]
    %v203 = vld [vmem:[#allocation5 + $0x2c8] sm:$0xff]
    %v204 = vld [vmem:[#allocation5 + $0x2d0] sm:$0xff]
    %v205 = vld [vmem:[#allocation5 + $0x2d8] sm:$0xff]
    %v206 = vld [vmem:[#allocation5 + $0x2e0] sm:$0xff]
    %v207 = vld [vmem:[#allocation5 + $0x2e8] sm:$0xff]
    %v208 = vld [vmem:[#allocation5 + $0x2f0] sm:$0xff]
    %v209 = vld [vmem:[#allocation5 + $0x2f8] sm:$0xff]
    %v210 = vld [vmem:[#allocation5 + $0x300] sm:$0xff]
    %v211 = vld [vmem:[#allocation5 + $0x308] sm:$0xff]
    %v212 = vld [vmem:[#allocation5 + $0x310] sm:$0xff]
    %v213 = vld [vmem:[#allocation5 + $0x318] sm:$0xff]
    %v214 = vld [vmem:[#allocation5 + $0x320] sm:$0xff]
    %v215 = vld [vmem:[#allocation5 + $0x328] sm:$0xff]
    %v216 = vld [vmem:[#allocation5 + $0x330] sm:$0xff]
    %v217 = vld [vmem:[#allocation5 + $0x338] sm:$0xff]
    %v218 = vld [vmem:[#allocation5 + $0x340] sm:$0xff]
    %v219 = vld [vmem:[#allocation5 + $0x348] sm:$0xff]
    %v220 = vld [vmem:[#allocation5 + $0x350] sm:$0xff]
    %v221 = vld [vmem:[#allocation5 + $0x358] sm:$0xff]
    %v222 = vld [vmem:[#allocation5 + $0x360] sm:$0xff]
    %v223 = vld [vmem:[#allocation5 + $0x368] sm:$0xff]
    %v224 = vld [vmem:[#allocation5 + $0x370] sm:$0xff]
    %v225 = vld [vmem:[#allocation5 + $0x378] sm:$0xff]
    %v226 = vld [vmem:[#allocation5 + $0x380] sm:$0xff]
    %v227 = vld [vmem:[#allocation5 + $0x388] sm:$0xff]
    %v228 = vld [vmem:[#allocation5 + $0x390] sm:$0xff]
    %v229 = vld [vmem:[#allocation5 + $0x398] sm:$0xff]
    %v230 = vld [vmem:[#allocation5 + $0x3a0] sm:$0xff]
    %v231 = vld [vmem:[#allocation5 + $0x3a8] sm:$0xff]
    %v232 = vld [vmem:[#allocation5 + $0x3b0] sm:$0xff]
    %v233 = vld [vmem:[#allocation5 + $0x3b8] sm:$0xff]
    %v234 = vld [vmem:[#allocation5 + $0x3c0] sm:$0xff]
    %v235 = vld [vmem:[#allocation5 + $0x3c8] sm:$0xff]
    %v236 = vld [vmem:[#allocation5 + $0x3d0] sm:$0xff]
    %v237 = vld [vmem:[#allocation5 + $0x3d8] sm:$0xff]
    %v238 = vld [vmem:[#allocation5 + $0x3e0] sm:$0xff]
    %v239 = vld [vmem:[#allocation5 + $0x3e8] sm:$0xff]
    %v240 = vld [vmem:[#allocation5 + $0x3f0] sm:$0xff]
    %v241 = vld [vmem:[#allocation5 + $0x3f8] sm:$0xff]
    %v242 = vld [vmem:[%s2] sm:$0x3]
    %v244 = vlaneseq
    %v245 = vshrl.u32 %v244, 7
    %v246 = vsub.s32 0, %v245
    %v247 = vrot.slane %v242, %v246
    %v248 = vlaneseq
    %v249 = vshrl.u32 %v248, 7
    %v250 = vsub.s32 1, %v249
    %v251 = vrot.slane %v242, %v250
    %v382 = vunpack.c.l.b16 %v114
    %v383 = vunpack.c.h.b16 %v114
    %v384 = vunpack.c.l.b16 %v115
    %v385 = vunpack.c.h.b16 %v115
    %v386 = vunpack.c.l.b16 %v116
    %v387 = vunpack.c.h.b16 %v116
    %v388 = vunpack.c.l.b16 %v117
    %v389 = vunpack.c.h.b16 %v117
    %v390 = vunpack.c.l.b16 %v118
    %v391 = vunpack.c.h.b16 %v118
    %v392 = vunpack.c.l.b16 %v119
    %v393 = vunpack.c.h.b16 %v119
    %v394 = vunpack.c.l.b16 %v120
    %v395 = vunpack.c.h.b16 %v120
    %v396 = vunpack.c.l.b16 %v121
    %v397 = vunpack.c.h.b16 %v121
    %v398 = vunpack.c.l.b16 %v122
    %v399 = vunpack.c.h.b16 %v122
    %v400 = vunpack.c.l.b16 %v123
    %v401 = vunpack.c.h.b16 %v123
    %v402 = vunpack.c.l.b16 %v124
    %v403 = vunpack.c.h.b16 %v124
    %v404 = vunpack.c.l.b16 %v125
    %v405 = vunpack.c.h.b16 %v125
    %v406 = vunpack.c.l.b16 %v126
    %v407 = vunpack.c.h.b16 %v126
    %v408 = vunpack.c.l.b16 %v127
    %v409 = vunpack.c.h.b16 %v127
    %v410 = vunpack.c.l.b16 %v128
    %v411 = vunpack.c.h.b16 %v128
    %v412 = vunpack.c.l.b16 %v129
    %v413 = vunpack.c.h.b16 %v129
    %v414 = vunpack.c.l.b16 %v130
    %v415 = vunpack.c.h.b16 %v130
    %v416 = vunpack.c.l.b16 %v131
    %v417 = vunpack.c.h.b16 %v131
    %v418 = vunpack.c.l.b16 %v132
    %v419 = vunpack.c.h.b16 %v132
    %v420 = vunpack.c.l.b16 %v133
    %v421 = vunpack.c.h.b16 %v133
    %v422 = vunpack.c.l.b16 %v134
    %v423 = vunpack.c.h.b16 %v134
    %v424 = vunpack.c.l.b16 %v135
    %v425 = vunpack.c.h.b16 %v135
    %v426 = vunpack.c.l.b16 %v136
    %v427 = vunpack.c.h.b16 %v136
    %v428 = vunpack.c.l.b16 %v137
    %v429 = vunpack.c.h.b16 %v137
    %v430 = vunpack.c.l.b16 %v138
    %v431 = vunpack.c.h.b16 %v138
    %v432 = vunpack.c.l.b16 %v139
    %v433 = vunpack.c.h.b16 %v139
    %v434 = vunpack.c.l.b16 %v140
    %v435 = vunpack.c.h.b16 %v140
    %v436 = vunpack.c.l.b16 %v141
    %v437 = vunpack.c.h.b16 %v141
    %v438 = vunpack.c.l.b16 %v142
    %v439 = vunpack.c.h.b16 %v142
    %v440 = vunpack.c.l.b16 %v143
    %v441 = vunpack.c.h.b16 %v143
    %v442 = vunpack.c.l.b16 %v144
    %v443 = vunpack.c.h.b16 %v144
    %v444 = vunpack.c.l.b16 %v145
    %v445 = vunpack.c.h.b16 %v145
    %v446 = vunpack.c.l.b16 %v146
    %v447 = vunpack.c.h.b16 %v146
    %v448 = vunpack.c.l.b16 %v147
    %v449 = vunpack.c.h.b16 %v147
    %v450 = vunpack.c.l.b16 %v148
    %v451 = vunpack.c.h.b16 %v148
    %v452 = vunpack.c.l.b16 %v149
    %v453 = vunpack.c.h.b16 %v149
    %v454 = vunpack.c.l.b16 %v150
    %v455 = vunpack.c.h.b16 %v150
    %v456 = vunpack.c.l.b16 %v151
    %v457 = vunpack.c.h.b16 %v151
    %v458 = vunpack.c.l.b16 %v152
    %v459 = vunpack.c.h.b16 %v152
    %v460 = vunpack.c.l.b16 %v153
    %v461 = vunpack.c.h.b16 %v153
    %v462 = vunpack.c.l.b16 %v154
    %v463 = vunpack.c.h.b16 %v154
    %v464 = vunpack.c.l.b16 %v155
    %v465 = vunpack.c.h.b16 %v155
    %v466 = vunpack.c.l.b16 %v156
    %v467 = vunpack.c.h.b16 %v156
    %v468 = vunpack.c.l.b16 %v157
    %v469 = vunpack.c.h.b16 %v157
    %v470 = vunpack.c.l.b16 %v158
    %v471 = vunpack.c.h.b16 %v158
    %v472 = vunpack.c.l.b16 %v159
    %v473 = vunpack.c.h.b16 %v159
    %v474 = vunpack.c.l.b16 %v160
    %v475 = vunpack.c.h.b16 %v160
    %v476 = vunpack.c.l.b16 %v161
    %v477 = vunpack.c.h.b16 %v161
    %v478 = vunpack.c.l.b16 %v162
    %v479 = vunpack.c.h.b16 %v162
    %v480 = vunpack.c.l.b16 %v163
    %v481 = vunpack.c.h.b16 %v163
    %v482 = vunpack.c.l.b16 %v164
    %v483 = vunpack.c.h.b16 %v164
    %v484 = vunpack.c.l.b16 %v165
    %v485 = vunpack.c.h.b16 %v165
    %v486 = vunpack.c.l.b16 %v166
    %v487 = vunpack.c.h.b16 %v166
    %v488 = vunpack.c.l.b16 %v167
    %v489 = vunpack.c.h.b16 %v167
    %v490 = vunpack.c.l.b16 %v168
    %v491 = vunpack.c.h.b16 %v168
    %v492 = vunpack.c.l.b16 %v169
    %v493 = vunpack.c.h.b16 %v169
    %v494 = vunpack.c.l.b16 %v170
    %v495 = vunpack.c.h.b16 %v170
    %v496 = vunpack.c.l.b16 %v171
    %v497 = vunpack.c.h.b16 %v171
    %v498 = vunpack.c.l.b16 %v172
    %v499 = vunpack.c.h.b16 %v172
    %v500 = vunpack.c.l.b16 %v173
    %v501 = vunpack.c.h.b16 %v173
    %v502 = vunpack.c.l.b16 %v174
    %v503 = vunpack.c.h.b16 %v174
    %v504 = vunpack.c.l.b16 %v175
    %v505 = vunpack.c.h.b16 %v175
    %v506 = vunpack.c.l.b16 %v176
    %v507 = vunpack.c.h.b16 %v176
    %v508 = vunpack.c.l.b16 %v177
    %v509 = vunpack.c.h.b16 %v177
    %v510 = vunpack.c.l.b16 %v178
    %v511 = vunpack.c.h.b16 %v178
    %v512 = vunpack.c.l.b16 %v179
    %v513 = vunpack.c.h.b16 %v179
    %v514 = vunpack.c.l.b16 %v180
    %v515 = vunpack.c.h.b16 %v180
    %v516 = vunpack.c.l.b16 %v181
    %v517 = vunpack.c.h.b16 %v181
    %v518 = vunpack.c.l.b16 %v182
    %v519 = vunpack.c.h.b16 %v182
    %v520 = vunpack.c.l.b16 %v183
    %v521 = vunpack.c.h.b16 %v183
    %v522 = vunpack.c.l.b16 %v184
    %v523 = vunpack.c.h.b16 %v184
    %v524 = vunpack.c.l.b16 %v185
    %v525 = vunpack.c.h.b16 %v185
    %v526 = vunpack.c.l.b16 %v186
    %v527 = vunpack.c.h.b16 %v186
    %v528 = vunpack.c.l.b16 %v187
    %v529 = vunpack.c.h.b16 %v187
    %v530 = vunpack.c.l.b16 %v188
    %v531 = vunpack.c.h.b16 %v188
    %v532 = vunpack.c.l.b16 %v189
    %v533 = vunpack.c.h.b16 %v189
    %v534 = vunpack.c.l.b16 %v190
    %v535 = vunpack.c.h.b16 %v190
    %v536 = vunpack.c.l.b16 %v191
    %v537 = vunpack.c.h.b16 %v191
    %v538 = vunpack.c.l.b16 %v192
    %v539 = vunpack.c.h.b16 %v192
    %v540 = vunpack.c.l.b16 %v193
    %v541 = vunpack.c.h.b16 %v193
    %v542 = vunpack.c.l.b16 %v194
    %v543 = vunpack.c.h.b16 %v194
    %v544 = vunpack.c.l.b16 %v195
    %v545 = vunpack.c.h.b16 %v195
    %v546 = vunpack.c.l.b16 %v196
    %v547 = vunpack.c.h.b16 %v196
    %v548 = vunpack.c.l.b16 %v197
    %v549 = vunpack.c.h.b16 %v197
    %v550 = vunpack.c.l.b16 %v198
    %v551 = vunpack.c.h.b16 %v198
    %v552 = vunpack.c.l.b16 %v199
    %v553 = vunpack.c.h.b16 %v199
    %v554 = vunpack.c.l.b16 %v200
    %v555 = vunpack.c.h.b16 %v200
    %v556 = vunpack.c.l.b16 %v201
    %v557 = vunpack.c.h.b16 %v201
    %v558 = vunpack.c.l.b16 %v202
    %v559 = vunpack.c.h.b16 %v202
    %v560 = vunpack.c.l.b16 %v203
    %v561 = vunpack.c.h.b16 %v203
    %v562 = vunpack.c.l.b16 %v204
    %v563 = vunpack.c.h.b16 %v204
    %v564 = vunpack.c.l.b16 %v205
    %v565 = vunpack.c.h.b16 %v205
    %v566 = vunpack.c.l.b16 %v206
    %v567 = vunpack.c.h.b16 %v206
    %v568 = vunpack.c.l.b16 %v207
    %v569 = vunpack.c.h.b16 %v207
    %v570 = vunpack.c.l.b16 %v208
    %v571 = vunpack.c.h.b16 %v208
    %v572 = vunpack.c.l.b16 %v209
    %v573 = vunpack.c.h.b16 %v209
    %v574 = vunpack.c.l.b16 %v210
    %v575 = vunpack.c.h.b16 %v210
    %v576 = vunpack.c.l.b16 %v211
    %v577 = vunpack.c.h.b16 %v211
    %v578 = vunpack.c.l.b16 %v212
    %v579 = vunpack.c.h.b16 %v212
    %v580 = vunpack.c.l.b16 %v213
    %v581 = vunpack.c.h.b16 %v213
    %v582 = vunpack.c.l.b16 %v214
    %v583 = vunpack.c.h.b16 %v214
    %v584 = vunpack.c.l.b16 %v215
    %v585 = vunpack.c.h.b16 %v215
    %v586 = vunpack.c.l.b16 %v216
    %v587 = vunpack.c.h.b16 %v216
    %v588 = vunpack.c.l.b16 %v217
    %v589 = vunpack.c.h.b16 %v217
    %v590 = vunpack.c.l.b16 %v218
    %v591 = vunpack.c.h.b16 %v218
    %v592 = vunpack.c.l.b16 %v219
    %v593 = vunpack.c.h.b16 %v219
    %v594 = vunpack.c.l.b16 %v220
    %v595 = vunpack.c.h.b16 %v220
    %v596 = vunpack.c.l.b16 %v221
    %v597 = vunpack.c.h.b16 %v221
    %v598 = vunpack.c.l.b16 %v222
    %v599 = vunpack.c.h.b16 %v222
    %v600 = vunpack.c.l.b16 %v223
    %v601 = vunpack.c.h.b16 %v223
    %v602 = vunpack.c.l.b16 %v224
    %v603 = vunpack.c.h.b16 %v224
    %v604 = vunpack.c.l.b16 %v225
    %v605 = vunpack.c.h.b16 %v225
    %v606 = vunpack.c.l.b16 %v226
    %v607 = vunpack.c.h.b16 %v226
    %v608 = vunpack.c.l.b16 %v227
    %v609 = vunpack.c.h.b16 %v227
    %v610 = vunpack.c.l.b16 %v228
    %v611 = vunpack.c.h.b16 %v228
    %v612 = vunpack.c.l.b16 %v229
    %v613 = vunpack.c.h.b16 %v229
    %v614 = vunpack.c.l.b16 %v230
    %v615 = vunpack.c.h.b16 %v230
    %v616 = vunpack.c.l.b16 %v231
    %v617 = vunpack.c.h.b16 %v231
    %v618 = vunpack.c.l.b16 %v232
    %v619 = vunpack.c.h.b16 %v232
    %v620 = vunpack.c.l.b16 %v233
    %v621 = vunpack.c.h.b16 %v233
    %v622 = vunpack.c.l.b16 %v234
    %v623 = vunpack.c.h.b16 %v234
    %v624 = vunpack.c.l.b16 %v235
    %v625 = vunpack.c.h.b16 %v235
    %v626 = vunpack.c.l.b16 %v236
    %v627 = vunpack.c.h.b16 %v236
    %v628 = vunpack.c.l.b16 %v237
    %v629 = vunpack.c.h.b16 %v237
    %v630 = vunpack.c.l.b16 %v238
    %v631 = vunpack.c.h.b16 %v238
    %v632 = vunpack.c.l.b16 %v239
    %v633 = vunpack.c.h.b16 %v239
    %v634 = vunpack.c.l.b16 %v240
    %v635 = vunpack.c.h.b16 %v240
    %v636 = vunpack.c.l.b16 %v241
    %v637 = vunpack.c.h.b16 %v241
    %v638 = vpack.c.b16 %v384, %v382
    %v639 = vpack.c.b16 %v385, %v383
    %v640 = vpack.c.b16 %v388, %v386
    %v641 = vpack.c.b16 %v389, %v387
    %v642 = vpack.c.b16 %v392, %v390
    %v643 = vpack.c.b16 %v393, %v391
    %v644 = vpack.c.b16 %v396, %v394
    %v645 = vpack.c.b16 %v397, %v395
    %v646 = vpack.c.b16 %v400, %v398
    %v647 = vpack.c.b16 %v401, %v399
    %v648 = vpack.c.b16 %v404, %v402
    %v649 = vpack.c.b16 %v405, %v403
    %v650 = vpack.c.b16 %v408, %v406
    %v651 = vpack.c.b16 %v409, %v407
    %v652 = vpack.c.b16 %v412, %v410
    %v653 = vpack.c.b16 %v413, %v411
    %v654 = vpack.c.b16 %v416, %v414
    %v655 = vpack.c.b16 %v417, %v415
    %v656 = vpack.c.b16 %v420, %v418
    %v657 = vpack.c.b16 %v421, %v419
    %v658 = vpack.c.b16 %v424, %v422
    %v659 = vpack.c.b16 %v425, %v423
    %v660 = vpack.c.b16 %v428, %v426
    %v661 = vpack.c.b16 %v429, %v427
    %v662 = vpack.c.b16 %v432, %v430
    %v663 = vpack.c.b16 %v433, %v431
    %v664 = vpack.c.b16 %v436, %v434
    %v665 = vpack.c.b16 %v437, %v435
    %v666 = vpack.c.b16 %v440, %v438
    %v667 = vpack.c.b16 %v441, %v439
    %v668 = vpack.c.b16 %v444, %v442
    %v669 = vpack.c.b16 %v445, %v443
    %v670 = vpack.c.b16 %v448, %v446
    %v671 = vpack.c.b16 %v449, %v447
    %v672 = vpack.c.b16 %v452, %v450
    %v673 = vpack.c.b16 %v453, %v451
    %v674 = vpack.c.b16 %v456, %v454
    %v675 = vpack.c.b16 %v457, %v455
    %v676 = vpack.c.b16 %v460, %v458
    %v677 = vpack.c.b16 %v461, %v459
    %v678 = vpack.c.b16 %v464, %v462
    %v679 = vpack.c.b16 %v465, %v463
    %v680 = vpack.c.b16 %v468, %v466
    %v681 = vpack.c.b16 %v469, %v467
    %v682 = vpack.c.b16 %v472, %v470
    %v683 = vpack.c.b16 %v473, %v471
    %v684 = vpack.c.b16 %v476, %v474
    %v685 = vpack.c.b16 %v477, %v475
    %v686 = vpack.c.b16 %v480, %v478
    %v687 = vpack.c.b16 %v481, %v479
    %v688 = vpack.c.b16 %v484, %v482
    %v689 = vpack.c.b16 %v485, %v483
    %v690 = vpack.c.b16 %v488, %v486
    %v691 = vpack.c.b16 %v489, %v487
    %v692 = vpack.c.b16 %v492, %v490
    %v693 = vpack.c.b16 %v493, %v491
    %v694 = vpack.c.b16 %v496, %v494
    %v695 = vpack.c.b16 %v497, %v495
    %v696 = vpack.c.b16 %v500, %v498
    %v697 = vpack.c.b16 %v501, %v499
    %v698 = vpack.c.b16 %v504, %v502
    %v699 = vpack.c.b16 %v505, %v503
    %v700 = vpack.c.b16 %v508, %v506
    %v701 = vpack.c.b16 %v509, %v507
    %v702 = vpack.c.b16 %v512, %v510
    %v703 = vpack.c.b16 %v513, %v511
    %v704 = vpack.c.b16 %v516, %v514
    %v705 = vpack.c.b16 %v517, %v515
    %v706 = vpack.c.b16 %v520, %v518
    %v707 = vpack.c.b16 %v521, %v519
    %v708 = vpack.c.b16 %v524, %v522
    %v709 = vpack.c.b16 %v525, %v523
    %v710 = vpack.c.b16 %v528, %v526
    %v711 = vpack.c.b16 %v529, %v527
    %v712 = vpack.c.b16 %v532, %v530
    %v713 = vpack.c.b16 %v533, %v531
    %v714 = vpack.c.b16 %v536, %v534
    %v715 = vpack.c.b16 %v537, %v535
    %v716 = vpack.c.b16 %v540, %v538
    %v717 = vpack.c.b16 %v541, %v539
    %v718 = vpack.c.b16 %v544, %v542
    %v719 = vpack.c.b16 %v545, %v543
    %v720 = vpack.c.b16 %v548, %v546
    %v721 = vpack.c.b16 %v549, %v547
    %v722 = vpack.c.b16 %v552, %v550
    %v723 = vpack.c.b16 %v553, %v551
    %v724 = vpack.c.b16 %v556, %v554
    %v725 = vpack.c.b16 %v557, %v555
    %v726 = vpack.c.b16 %v560, %v558
    %v727 = vpack.c.b16 %v561, %v559
    %v728 = vpack.c.b16 %v564, %v562
    %v729 = vpack.c.b16 %v565, %v563
    %v730 = vpack.c.b16 %v568, %v566
    %v731 = vpack.c.b16 %v569, %v567
    %v732 = vpack.c.b16 %v572, %v570
    %v733 = vpack.c.b16 %v573, %v571
    %v734 = vpack.c.b16 %v576, %v574
    %v735 = vpack.c.b16 %v577, %v575
    %v736 = vpack.c.b16 %v580, %v578
    %v737 = vpack.c.b16 %v581, %v579
    %v738 = vpack.c.b16 %v584, %v582
    %v739 = vpack.c.b16 %v585, %v583
    %v740 = vpack.c.b16 %v588, %v586
    %v741 = vpack.c.b16 %v589, %v587
    %v742 = vpack.c.b16 %v592, %v590
    %v743 = vpack.c.b16 %v593, %v591
    %v744 = vpack.c.b16 %v596, %v594
    %v745 = vpack.c.b16 %v597, %v595
    %v746 = vpack.c.b16 %v600, %v598
    %v747 = vpack.c.b16 %v601, %v599
    %v748 = vpack.c.b16 %v604, %v602
    %v749 = vpack.c.b16 %v605, %v603
    %v750 = vpack.c.b16 %v608, %v606
    %v751 = vpack.c.b16 %v609, %v607
    %v752 = vpack.c.b16 %v612, %v610
    %v753 = vpack.c.b16 %v613, %v611
    %v754 = vpack.c.b16 %v616, %v614
    %v755 = vpack.c.b16 %v617, %v615
    %v756 = vpack.c.b16 %v620, %v618
    %v757 = vpack.c.b16 %v621, %v619
    %v758 = vpack.c.b16 %v624, %v622
    %v759 = vpack.c.b16 %v625, %v623
    %v760 = vpack.c.b16 %v628, %v626
    %v761 = vpack.c.b16 %v629, %v627
    %v762 = vpack.c.b16 %v632, %v630
    %v763 = vpack.c.b16 %v633, %v631
    %v764 = vpack.c.b16 %v636, %v634
    %v765 = vpack.c.b16 %v637, %v635
    %894 = vmatprep.subr.bf16.mxu0 %v639
    %895 = vmatpush1.bf16.msra.mxu0 %v638
    %896 = vmatprep.subr.bf16.mxu0 %v641
    %897 = vmatpush1.bf16.msra.mxu0 %v640
    %898 = vmatprep.subr.bf16.mxu0 %v643
    %899 = vmatpush1.bf16.msra.mxu0 %v642
    %900 = vmatprep.subr.bf16.mxu0 %v645
    %901 = vmatpush1.bf16.msra.mxu0 %v644
    %902 = vmatprep.subr.bf16.mxu0 %v647
    %903 = vmatpush1.bf16.msra.mxu0 %v646
    %904 = vmatprep.subr.bf16.mxu0 %v649
    %905 = vmatpush1.bf16.msra.mxu0 %v648
    %906 = vmatprep.subr.bf16.mxu0 %v651
    %907 = vmatpush1.bf16.msra.mxu0 %v650
    %908 = vmatprep.subr.bf16.mxu0 %v653
    %909 = vmatpush1.bf16.msra.mxu0 %v652
    %910 = vmatprep.subr.bf16.mxu0 %v655
    %911 = vmatpush1.bf16.msra.mxu0 %v654
    %912 = vmatprep.subr.bf16.mxu0 %v657
    %913 = vmatpush1.bf16.msra.mxu0 %v656
    %914 = vmatprep.subr.bf16.mxu0 %v659
    %915 = vmatpush1.bf16.msra.mxu0 %v658
    %916 = vmatprep.subr.bf16.mxu0 %v661
    %917 = vmatpush1.bf16.msra.mxu0 %v660
    %918 = vmatprep.subr.bf16.mxu0 %v663
    %919 = vmatpush1.bf16.msra.mxu0 %v662
    %920 = vmatprep.subr.bf16.mxu0 %v665
    %921 = vmatpush1.bf16.msra.mxu0 %v664
    %922 = vmatprep.subr.bf16.mxu0 %v667
    %923 = vmatpush1.bf16.msra.mxu0 %v666
    %924 = vmatprep.subr.bf16.mxu0 %v669
    %925 = vmatpush1.bf16.msra.mxu0 %v668
    %926 = vmatprep.mubr.bf16.mxu0 %v107
    %927 = vmatmul.mubr.bf16.gmra.mrb[0].mxu0 %v106
    %v928 = vpop.f32.mrb[0].mxu0
    %v929 = vadd.f32 %v247, %v928
    %v930 = vpop.f32.mrb[0].mxu0
    %v931 = vadd.f32 %v251, %v930
    %v932 = vpop.f32.mrb[0].mxu0
    %v933 = vpop.f32.mrb[0].mxu0
    %934 = vdwg.mxu0
    %935 = vmatprep.subr.bf16.mxu0 %v671
    %936 = vmatpush1.bf16.msra.mxu0 %v670
    %937 = vmatprep.subr.bf16.mxu0 %v673
    %938 = vmatpush1.bf16.msra.mxu0 %v672
    %939 = vmatprep.subr.bf16.mxu0 %v675
    %940 = vmatpush1.bf16.msra.mxu0 %v674
    %941 = vmatprep.subr.bf16.mxu0 %v677
    %942 = vmatpush1.bf16.msra.mxu0 %v676
    %943 = vmatprep.subr.bf16.mxu0 %v679
    %944 = vmatpush1.bf16.msra.mxu0 %v678
    %945 = vmatprep.subr.bf16.mxu0 %v681
    %946 = vmatpush1.bf16.msra.mxu0 %v680
    %947 = vmatprep.subr.bf16.mxu0 %v683
    %948 = vmatpush1.bf16.msra.mxu0 %v682
    %949 = vmatprep.subr.bf16.mxu0 %v685
    %950 = vmatpush1.bf16.msra.mxu0 %v684
    %951 = vmatprep.subr.bf16.mxu0 %v687
    %952 = vmatpush1.bf16.msra.mxu0 %v686
    %953 = vmatprep.subr.bf16.mxu0 %v689
    %954 = vmatpush1.bf16.msra.mxu0 %v688
    %955 = vmatprep.subr.bf16.mxu0 %v691
    %956 = vmatpush1.bf16.msra.mxu0 %v690
    %957 = vmatprep.subr.bf16.mxu0 %v693
    %958 = vmatpush1.bf16.msra.mxu0 %v692
    %959 = vmatprep.subr.bf16.mxu0 %v695
    %960 = vmatpush1.bf16.msra.mxu0 %v694
    %961 = vmatprep.subr.bf16.mxu0 %v697
    %962 = vmatpush1.bf16.msra.mxu0 %v696
    %963 = vmatprep.subr.bf16.mxu0 %v699
    %964 = vmatpush1.bf16.msra.mxu0 %v698
    %965 = vmatprep.subr.bf16.mxu0 %v701
    %966 = vmatpush1.bf16.msra.mxu0 %v700
    %967 = vmatprep.mubr.bf16.mxu0 %v109
    %968 = vmatmul.mubr.bf16.gmra.mrb[0].mxu0 %v108
    %v969 = vpop.f32.mrb[0].mxu0
    %v970 = vadd.f32 %v929, %v969
    %v971 = vpop.f32.mrb[0].mxu0
    %v972 = vadd.f32 %v931, %v971
    %v973 = vpop.f32.mrb[0].mxu0
    %v974 = vpop.f32.mrb[0].mxu0
    %975 = vdwg.mxu0
    %976 = vmatprep.subr.bf16.mxu0 %v703
    %977 = vmatpush1.bf16.msra.mxu0 %v702
    %978 = vmatprep.subr.bf16.mxu0 %v705
    %979 = vmatpush1.bf16.msra.mxu0 %v704
    %980 = vmatprep.subr.bf16.mxu0 %v707
    %981 = vmatpush1.bf16.msra.mxu0 %v706
    %982 = vmatprep.subr.bf16.mxu0 %v709
    %983 = vmatpush1.bf16.msra.mxu0 %v708
    %984 = vmatprep.subr.bf16.mxu0 %v711
    %985 = vmatpush1.bf16.msra.mxu0 %v710
    %986 = vmatprep.subr.bf16.mxu0 %v713
    %987 = vmatpush1.bf16.msra.mxu0 %v712
    %988 = vmatprep.subr.bf16.mxu0 %v715
    %989 = vmatpush1.bf16.msra.mxu0 %v714
    %990 = vmatprep.subr.bf16.mxu0 %v717
    %991 = vmatpush1.bf16.msra.mxu0 %v716
    %992 = vmatprep.subr.bf16.mxu0 %v719
    %993 = vmatpush1.bf16.msra.mxu0 %v718
    %994 = vmatprep.subr.bf16.mxu0 %v721
    %995 = vmatpush1.bf16.msra.mxu0 %v720
    %996 = vmatprep.subr.bf16.mxu0 %v723
    %997 = vmatpush1.bf16.msra.mxu0 %v722
    %998 = vmatprep.subr.bf16.mxu0 %v725
    %999 = vmatpush1.bf16.msra.mxu0 %v724
    %1000 = vmatprep.subr.bf16.mxu0 %v727
    %1001 = vmatpush1.bf16.msra.mxu0 %v726
    %1002 = vmatprep.subr.bf16.mxu0 %v729
    %1003 = vmatpush1.bf16.msra.mxu0 %v728
    %1004 = vmatprep.subr.bf16.mxu0 %v731
    %1005 = vmatpush1.bf16.msra.mxu0 %v730
    %1006 = vmatprep.subr.bf16.mxu0 %v733
    %1007 = vmatpush1.bf16.msra.mxu0 %v732
    %1008 = vmatprep.mubr.bf16.mxu0 %v111
    %1009 = vmatmul.mubr.bf16.gmra.mrb[0].mxu0 %v110
    %v1010 = vpop.f32.mrb[0].mxu0
    %v1011 = vadd.f32 %v970, %v1010
    %v1012 = vpop.f32.mrb[0].mxu0
    %v1013 = vadd.f32 %v972, %v1012
    %v1014 = vpop.f32.mrb[0].mxu0
    %v1015 = vpop.f32.mrb[0].mxu0
    %1016 = vdwg.mxu0
    %1017 = vmatprep.subr.bf16.mxu0 %v735
    %1018 = vmatpush1.bf16.msra.mxu0 %v734
    %1019 = vmatprep.subr.bf16.mxu0 %v737
    %1020 = vmatpush1.bf16.msra.mxu0 %v736
    %1021 = vmatprep.subr.bf16.mxu0 %v739
    %1022 = vmatpush1.bf16.msra.mxu0 %v738
    %1023 = vmatprep.subr.bf16.mxu0 %v741
    %1024 = vmatpush1.bf16.msra.mxu0 %v740
    %1025 = vmatprep.subr.bf16.mxu0 %v743
    %1026 = vmatpush1.bf16.msra.mxu0 %v742
    %1027 = vmatprep.subr.bf16.mxu0 %v745
    %1028 = vmatpush1.bf16.msra.mxu0 %v744
    %1029 = vmatprep.subr.bf16.mxu0 %v747
    %1030 = vmatpush1.bf16.msra.mxu0 %v746
    %1031 = vmatprep.subr.bf16.mxu0 %v749
    %1032 = vmatpush1.bf16.msra.mxu0 %v748
    %1033 = vmatprep.subr.bf16.mxu0 %v751
    %1034 = vmatpush1.bf16.msra.mxu0 %v750
    %1035 = vmatprep.subr.bf16.mxu0 %v753
    %1036 = vmatpush1.bf16.msra.mxu0 %v752
    %1037 = vmatprep.subr.bf16.mxu0 %v755
    %1038 = vmatpush1.bf16.msra.mxu0 %v754
    %1039 = vmatprep.subr.bf16.mxu0 %v757
    %1040 = vmatpush1.bf16.msra.mxu0 %v756
    %1041 = vmatprep.subr.bf16.mxu0 %v759
    %1042 = vmatpush1.bf16.msra.mxu0 %v758
    %1043 = vmatprep.subr.bf16.mxu0 %v761
    %1044 = vmatpush1.bf16.msra.mxu0 %v760
    %1045 = vmatprep.subr.bf16.mxu0 %v763
    %1046 = vmatpush1.bf16.msra.mxu0 %v762
    %1047 = vmatprep.subr.bf16.mxu0 %v765
    %1048 = vmatpush1.bf16.msra.mxu0 %v764
    %1049 = vmatprep.mubr.bf16.mxu0 %v113
    %1050 = vmatmul.mubr.bf16.gmra.mrb[0].mxu0 %v112
    %v1051 = vpop.f32.mrb[0].mxu0
    %v1052 = vadd.f32 %v1011, %v1051
    %v1053 = vpop.f32.mrb[0].mxu0
    %v1054 = vadd.f32 %v1013, %v1053
    %v1055 = vpop.f32.mrb[0].mxu0
    %v1056 = vpop.f32.mrb[0].mxu0
    %1057 = vdwg.mxu0
    %v1058 = vmul.f32 %v1052, 0.2
    %v1059 = vmul.f32 %v1054, 0.2
    %v1060 = vmax.f32 %v1052, %v1058
    %v1061 = vmax.f32 %v1054, %v1059
    %v1062 = vpack.c.bf16 %v1060, %v1060
    %v1063 = vpack.c.bf16 %v1061, %v1061
    %v1064 = vld [vmem:[#allocation7] sm:$0xff]
    %v1065 = vld [vmem:[#allocation7 + $0x8] sm:$0xff]
    %v1066 = vld [vmem:[#allocation7 + $0x10] sm:$0xff]
    %v1067 = vld [vmem:[#allocation7 + $0x18] sm:$0xff]
    %v1068 = vld [vmem:[#allocation7 + $0x20] sm:$0xff]
    %v1069 = vld [vmem:[#allocation7 + $0x28] sm:$0xff]
    %v1070 = vld [vmem:[#allocation7 + $0x30] sm:$0xff]
    %v1071 = vld [vmem:[#allocation7 + $0x38] sm:$0xff]
    %v1072 = vld [vmem:[#allocation7 + $0x40] sm:$0xff]
    %v1073 = vld [vmem:[#allocation7 + $0x48] sm:$0xff]
    %v1074 = vld [vmem:[#allocation7 + $0x50] sm:$0xff]
    %v1075 = vld [vmem:[#allocation7 + $0x58] sm:$0xff]
    %v1076 = vld [vmem:[#allocation7 + $0x60] sm:$0xff]
    %v1077 = vld [vmem:[#allocation7 + $0x68] sm:$0xff]
    %v1078 = vld [vmem:[#allocation7 + $0x70] sm:$0xff]
    %v1079 = vld [vmem:[#allocation7 + $0x78] sm:$0xff]
    %v1080 = vld [vmem:[#allocation7 + $0x80] sm:$0xff]
    %v1081 = vld [vmem:[#allocation7 + $0x88] sm:$0xff]
    %v1082 = vld [vmem:[#allocation7 + $0x90] sm:$0xff]
    %v1083 = vld [vmem:[#allocation7 + $0x98] sm:$0xff]
    %v1084 = vld [vmem:[#allocation7 + $0xa0] sm:$0xff]
    %v1085 = vld [vmem:[#allocation7 + $0xa8] sm:$0xff]
    %v1086 = vld [vmem:[#allocation7 + $0xb0] sm:$0xff]
    %v1087 = vld [vmem:[#allocation7 + $0xb8] sm:$0xff]
    %v1088 = vld [vmem:[#allocation7 + $0xc0] sm:$0xff]
    %v1089 = vld [vmem:[#allocation7 + $0xc8] sm:$0xff]
    %v1090 = vld [vmem:[#allocation7 + $0xd0] sm:$0xff]
    %v1091 = vld [vmem:[#allocation7 + $0xd8] sm:$0xff]
    %v1092 = vld [vmem:[#allocation7 + $0xe0] sm:$0xff]
    %v1093 = vld [vmem:[#allocation7 + $0xe8] sm:$0xff]
    %v1094 = vld [vmem:[#allocation7 + $0xf0] sm:$0xff]
    %v1095 = vld [vmem:[#allocation7 + $0xf8] sm:$0xff]
    %v1096 = vld [vmem:[#allocation7 + $0x100] sm:$0xff]
    %v1097 = vld [vmem:[#allocation7 + $0x108] sm:$0xff]
    %v1098 = vld [vmem:[#allocation7 + $0x110] sm:$0xff]
    %v1099 = vld [vmem:[#allocation7 + $0x118] sm:$0xff]
    %v1100 = vld [vmem:[#allocation7 + $0x120] sm:$0xff]
    %v1101 = vld [vmem:[#allocation7 + $0x128] sm:$0xff]
    %v1102 = vld [vmem:[#allocation7 + $0x130] sm:$0xff]
    %v1103 = vld [vmem:[#allocation7 + $0x138] sm:$0xff]
    %v1104 = vld [vmem:[#allocation7 + $0x140] sm:$0xff]
    %v1105 = vld [vmem:[#allocation7 + $0x148] sm:$0xff]
    %v1106 = vld [vmem:[#allocation7 + $0x150] sm:$0xff]
    %v1107 = vld [vmem:[#allocation7 + $0x158] sm:$0xff]
    %v1108 = vld [vmem:[#allocation7 + $0x160] sm:$0xff]
    %v1109 = vld [vmem:[#allocation7 + $0x168] sm:$0xff]
    %v1110 = vld [vmem:[#allocation7 + $0x170] sm:$0xff]
    %v1111 = vld [vmem:[#allocation7 + $0x178] sm:$0xff]
    %v1112 = vld [vmem:[#allocation7 + $0x180] sm:$0xff]
    %v1113 = vld [vmem:[#allocation7 + $0x188] sm:$0xff]
    %v1114 = vld [vmem:[#allocation7 + $0x190] sm:$0xff]
    %v1115 = vld [vmem:[#allocation7 + $0x198] sm:$0xff]
    %v1116 = vld [vmem:[#allocation7 + $0x1a0] sm:$0xff]
    %v1117 = vld [vmem:[#allocation7 + $0x1a8] sm:$0xff]
    %v1118 = vld [vmem:[#allocation7 + $0x1b0] sm:$0xff]
    %v1119 = vld [vmem:[#allocation7 + $0x1b8] sm:$0xff]
    %v1120 = vld [vmem:[#allocation7 + $0x1c0] sm:$0xff]
    %v1121 = vld [vmem:[#allocation7 + $0x1c8] sm:$0xff]
    %v1122 = vld [vmem:[#allocation7 + $0x1d0] sm:$0xff]
    %v1123 = vld [vmem:[#allocation7 + $0x1d8] sm:$0xff]
    %v1124 = vld [vmem:[#allocation7 + $0x1e0] sm:$0xff]
    %v1125 = vld [vmem:[#allocation7 + $0x1e8] sm:$0xff]
    %v1126 = vld [vmem:[#allocation7 + $0x1f0] sm:$0xff]
    %v1127 = vld [vmem:[#allocation7 + $0x1f8] sm:$0xff]
    %v1128 = vld [vmem:[#allocation8] sm:$0xf]
    %v1130 = vlaneseq
    %v1131 = vshrl.u32 %v1130, 7
    %v1132 = vsub.s32 0, %v1131
    %v1133 = vrot.slane %v1128, %v1132
    %v1134 = vlaneseq
    %v1135 = vshrl.u32 %v1134, 7
    %v1136 = vsub.s32 1, %v1135
    %v1137 = vrot.slane %v1128, %v1136
    %v1138 = vlaneseq
    %v1139 = vshrl.u32 %v1138, 7
    %v1140 = vsub.s32 2, %v1139
    %v1141 = vrot.slane %v1128, %v1140
    %v1142 = vlaneseq
    %v1143 = vshrl.u32 %v1142, 7
    %v1144 = vsub.s32 3, %v1143
    %v1145 = vrot.slane %v1128, %v1144
    %v1214 = vunpack.c.l.b16 %v1064
    %v1215 = vunpack.c.h.b16 %v1064
    %v1216 = vunpack.c.l.b16 %v1065
    %v1217 = vunpack.c.h.b16 %v1065
    %v1218 = vunpack.c.l.b16 %v1066
    %v1219 = vunpack.c.h.b16 %v1066
    %v1220 = vunpack.c.l.b16 %v1067
    %v1221 = vunpack.c.h.b16 %v1067
    %v1222 = vunpack.c.l.b16 %v1068
    %v1223 = vunpack.c.h.b16 %v1068
    %v1224 = vunpack.c.l.b16 %v1069
    %v1225 = vunpack.c.h.b16 %v1069
    %v1226 = vunpack.c.l.b16 %v1070
    %v1227 = vunpack.c.h.b16 %v1070
    %v1228 = vunpack.c.l.b16 %v1071
    %v1229 = vunpack.c.h.b16 %v1071
    %v1230 = vunpack.c.l.b16 %v1072
    %v1231 = vunpack.c.h.b16 %v1072
    %v1232 = vunpack.c.l.b16 %v1073
    %v1233 = vunpack.c.h.b16 %v1073
    %v1234 = vunpack.c.l.b16 %v1074
    %v1235 = vunpack.c.h.b16 %v1074
    %v1236 = vunpack.c.l.b16 %v1075
    %v1237 = vunpack.c.h.b16 %v1075
    %v1238 = vunpack.c.l.b16 %v1076
    %v1239 = vunpack.c.h.b16 %v1076
    %v1240 = vunpack.c.l.b16 %v1077
    %v1241 = vunpack.c.h.b16 %v1077
    %v1242 = vunpack.c.l.b16 %v1078
    %v1243 = vunpack.c.h.b16 %v1078
    %v1244 = vunpack.c.l.b16 %v1079
    %v1245 = vunpack.c.h.b16 %v1079
    %v1246 = vunpack.c.l.b16 %v1080
    %v1247 = vunpack.c.h.b16 %v1080
    %v1248 = vunpack.c.l.b16 %v1081
    %v1249 = vunpack.c.h.b16 %v1081
    %v1250 = vunpack.c.l.b16 %v1082
    %v1251 = vunpack.c.h.b16 %v1082
    %v1252 = vunpack.c.l.b16 %v1083
    %v1253 = vunpack.c.h.b16 %v1083
    %v1254 = vunpack.c.l.b16 %v1084
    %v1255 = vunpack.c.h.b16 %v1084
    %v1256 = vunpack.c.l.b16 %v1085
    %v1257 = vunpack.c.h.b16 %v1085
    %v1258 = vunpack.c.l.b16 %v1086
    %v1259 = vunpack.c.h.b16 %v1086
    %v1260 = vunpack.c.l.b16 %v1087
    %v1261 = vunpack.c.h.b16 %v1087
    %v1262 = vunpack.c.l.b16 %v1088
    %v1263 = vunpack.c.h.b16 %v1088
    %v1264 = vunpack.c.l.b16 %v1089
    %v1265 = vunpack.c.h.b16 %v1089
    %v1266 = vunpack.c.l.b16 %v1090
    %v1267 = vunpack.c.h.b16 %v1090
    %v1268 = vunpack.c.l.b16 %v1091
    %v1269 = vunpack.c.h.b16 %v1091
    %v1270 = vunpack.c.l.b16 %v1092
    %v1271 = vunpack.c.h.b16 %v1092
    %v1272 = vunpack.c.l.b16 %v1093
    %v1273 = vunpack.c.h.b16 %v1093
    %v1274 = vunpack.c.l.b16 %v1094
    %v1275 = vunpack.c.h.b16 %v1094
    %v1276 = vunpack.c.l.b16 %v1095
    %v1277 = vunpack.c.h.b16 %v1095
    %v1278 = vunpack.c.l.b16 %v1096
    %v1279 = vunpack.c.h.b16 %v1096
    %v1280 = vunpack.c.l.b16 %v1097
    %v1281 = vunpack.c.h.b16 %v1097
    %v1282 = vunpack.c.l.b16 %v1098
    %v1283 = vunpack.c.h.b16 %v1098
    %v1284 = vunpack.c.l.b16 %v1099
    %v1285 = vunpack.c.h.b16 %v1099
    %v1286 = vunpack.c.l.b16 %v1100
    %v1287 = vunpack.c.h.b16 %v1100
    %v1288 = vunpack.c.l.b16 %v1101
    %v1289 = vunpack.c.h.b16 %v1101
    %v1290 = vunpack.c.l.b16 %v1102
    %v1291 = vunpack.c.h.b16 %v1102
    %v1292 = vunpack.c.l.b16 %v1103
    %v1293 = vunpack.c.h.b16 %v1103
    %v1294 = vunpack.c.l.b16 %v1104
    %v1295 = vunpack.c.h.b16 %v1104
    %v1296 = vunpack.c.l.b16 %v1105
    %v1297 = vunpack.c.h.b16 %v1105
    %v1298 = vunpack.c.l.b16 %v1106
    %v1299 = vunpack.c.h.b16 %v1106
    %v1300 = vunpack.c.l.b16 %v1107
    %v1301 = vunpack.c.h.b16 %v1107
    %v1302 = vunpack.c.l.b16 %v1108
    %v1303 = vunpack.c.h.b16 %v1108
    %v1304 = vunpack.c.l.b16 %v1109
    %v1305 = vunpack.c.h.b16 %v1109
    %v1306 = vunpack.c.l.b16 %v1110
    %v1307 = vunpack.c.h.b16 %v1110
    %v1308 = vunpack.c.l.b16 %v1111
    %v1309 = vunpack.c.h.b16 %v1111
    %v1310 = vunpack.c.l.b16 %v1112
    %v1311 = vunpack.c.h.b16 %v1112
    %v1312 = vunpack.c.l.b16 %v1113
    %v1313 = vunpack.c.h.b16 %v1113
    %v1314 = vunpack.c.l.b16 %v1114
    %v1315 = vunpack.c.h.b16 %v1114
    %v1316 = vunpack.c.l.b16 %v1115
    %v1317 = vunpack.c.h.b16 %v1115
    %v1318 = vunpack.c.l.b16 %v1116
    %v1319 = vunpack.c.h.b16 %v1116
    %v1320 = vunpack.c.l.b16 %v1117
    %v1321 = vunpack.c.h.b16 %v1117
    %v1322 = vunpack.c.l.b16 %v1118
    %v1323 = vunpack.c.h.b16 %v1118
    %v1324 = vunpack.c.l.b16 %v1119
    %v1325 = vunpack.c.h.b16 %v1119
    %v1326 = vunpack.c.l.b16 %v1120
    %v1327 = vunpack.c.h.b16 %v1120
    %v1328 = vunpack.c.l.b16 %v1121
    %v1329 = vunpack.c.h.b16 %v1121
    %v1330 = vunpack.c.l.b16 %v1122
    %v1331 = vunpack.c.h.b16 %v1122
    %v1332 = vunpack.c.l.b16 %v1123
    %v1333 = vunpack.c.h.b16 %v1123
    %v1334 = vunpack.c.l.b16 %v1124
    %v1335 = vunpack.c.h.b16 %v1124
    %v1336 = vunpack.c.l.b16 %v1125
    %v1337 = vunpack.c.h.b16 %v1125
    %v1338 = vunpack.c.l.b16 %v1126
    %v1339 = vunpack.c.h.b16 %v1126
    %v1340 = vunpack.c.l.b16 %v1127
    %v1341 = vunpack.c.h.b16 %v1127
    %v1342 = vpack.c.b16 %v1218, %v1214
    %v1343 = vpack.c.b16 %v1219, %v1215
    %v1344 = vpack.c.b16 %v1220, %v1216
    %v1345 = vpack.c.b16 %v1221, %v1217
    %v1346 = vpack.c.b16 %v1226, %v1222
    %v1347 = vpack.c.b16 %v1227, %v1223
    %v1348 = vpack.c.b16 %v1228, %v1224
    %v1349 = vpack.c.b16 %v1229, %v1225
    %v1350 = vpack.c.b16 %v1234, %v1230
    %v1351 = vpack.c.b16 %v1235, %v1231
    %v1352 = vpack.c.b16 %v1236, %v1232
    %v1353 = vpack.c.b16 %v1237, %v1233
    %v1354 = vpack.c.b16 %v1242, %v1238
    %v1355 = vpack.c.b16 %v1243, %v1239
    %v1356 = vpack.c.b16 %v1244, %v1240
    %v1357 = vpack.c.b16 %v1245, %v1241
    %v1358 = vpack.c.b16 %v1250, %v1246
    %v1359 = vpack.c.b16 %v1251, %v1247
    %v1360 = vpack.c.b16 %v1252, %v1248
    %v1361 = vpack.c.b16 %v1253, %v1249
    %v1362 = vpack.c.b16 %v1258, %v1254
    %v1363 = vpack.c.b16 %v1259, %v1255
    %v1364 = vpack.c.b16 %v1260, %v1256
    %v1365 = vpack.c.b16 %v1261, %v1257
    %v1366 = vpack.c.b16 %v1266, %v1262
    %v1367 = vpack.c.b16 %v1267, %v1263
    %v1368 = vpack.c.b16 %v1268, %v1264
    %v1369 = vpack.c.b16 %v1269, %v1265
    %v1370 = vpack.c.b16 %v1274, %v1270
    %v1371 = vpack.c.b16 %v1275, %v1271
    %v1372 = vpack.c.b16 %v1276, %v1272
    %v1373 = vpack.c.b16 %v1277, %v1273
    %v1374 = vpack.c.b16 %v1282, %v1278
    %v1375 = vpack.c.b16 %v1283, %v1279
    %v1376 = vpack.c.b16 %v1284, %v1280
    %v1377 = vpack.c.b16 %v1285, %v1281
    %v1378 = vpack.c.b16 %v1290, %v1286
    %v1379 = vpack.c.b16 %v1291, %v1287
    %v1380 = vpack.c.b16 %v1292, %v1288
    %v1381 = vpack.c.b16 %v1293, %v1289
    %v1382 = vpack.c.b16 %v1298, %v1294
    %v1383 = vpack.c.b16 %v1299, %v1295
    %v1384 = vpack.c.b16 %v1300, %v1296
    %v1385 = vpack.c.b16 %v1301, %v1297
    %v1386 = vpack.c.b16 %v1306, %v1302
    %v1387 = vpack.c.b16 %v1307, %v1303
    %v1388 = vpack.c.b16 %v1308, %v1304
    %v1389 = vpack.c.b16 %v1309, %v1305
    %v1390 = vpack.c.b16 %v1314, %v1310
    %v1391 = vpack.c.b16 %v1315, %v1311
    %v1392 = vpack.c.b16 %v1316, %v1312
    %v1393 = vpack.c.b16 %v1317, %v1313
    %v1394 = vpack.c.b16 %v1322, %v1318
    %v1395 = vpack.c.b16 %v1323, %v1319
    %v1396 = vpack.c.b16 %v1324, %v1320
    %v1397 = vpack.c.b16 %v1325, %v1321
    %v1398 = vpack.c.b16 %v1330, %v1326
    %v1399 = vpack.c.b16 %v1331, %v1327
    %v1400 = vpack.c.b16 %v1332, %v1328
    %v1401 = vpack.c.b16 %v1333, %v1329
    %v1402 = vpack.c.b16 %v1338, %v1334
    %v1403 = vpack.c.b16 %v1339, %v1335
    %v1404 = vpack.c.b16 %v1340, %v1336
    %v1405 = vpack.c.b16 %v1341, %v1337
    %1470 = vmatprep.subr.bf16.mxu0 %v1343
    %1471 = vmatpush1.bf16.msra.mxu0 %v1342
    %1472 = vmatprep.subr.bf16.mxu0 %v1347
    %1473 = vmatpush1.bf16.msra.mxu0 %v1346
    %1474 = vmatprep.subr.bf16.mxu0 %v1351
    %1475 = vmatpush1.bf16.msra.mxu0 %v1350
    %1476 = vmatprep.subr.bf16.mxu0 %v1355
    %1477 = vmatpush1.bf16.msra.mxu0 %v1354
    %1478 = vmatprep.subr.bf16.mxu0 %v1359
    %1479 = vmatpush1.bf16.msra.mxu0 %v1358
    %1480 = vmatprep.subr.bf16.mxu0 %v1363
    %1481 = vmatpush1.bf16.msra.mxu0 %v1362
    %1482 = vmatprep.subr.bf16.mxu0 %v1367
    %1483 = vmatpush1.bf16.msra.mxu0 %v1366
    %1484 = vmatprep.subr.bf16.mxu0 %v1371
    %1485 = vmatpush1.bf16.msra.mxu0 %v1370
    %1486 = vmatprep.subr.bf16.mxu0 %v1375
    %1487 = vmatpush1.bf16.msra.mxu0 %v1374
    %1488 = vmatprep.subr.bf16.mxu0 %v1379
    %1489 = vmatpush1.bf16.msra.mxu0 %v1378
    %1490 = vmatprep.subr.bf16.mxu0 %v1383
    %1491 = vmatpush1.bf16.msra.mxu0 %v1382
    %1492 = vmatprep.subr.bf16.mxu0 %v1387
    %1493 = vmatpush1.bf16.msra.mxu0 %v1386
    %1494 = vmatprep.subr.bf16.mxu0 %v1391
    %1495 = vmatpush1.bf16.msra.mxu0 %v1390
    %1496 = vmatprep.subr.bf16.mxu0 %v1395
    %1497 = vmatpush1.bf16.msra.mxu0 %v1394
    %1498 = vmatprep.subr.bf16.mxu0 %v1399
    %1499 = vmatpush1.bf16.msra.mxu0 %v1398
    %1500 = vmatprep.subr.bf16.mxu0 %v1403
    %1501 = vmatpush1.bf16.msra.mxu0 %v1402
    %1502 = vmatprep.mubr.bf16.mxu0 %v1063
    %1503 = vmatmul.mubr.bf16.gmra.mrb[0].mxu0 %v1062
    %v1504 = vpop.f32.mrb[0].mxu0
    %v1505 = vadd.f32 %v1133, %v1504
    %v1506 = vpop.f32.mrb[0].mxu0
    %v1507 = vadd.f32 %v1137, %v1506
    %v1508 = vpop.f32.mrb[0].mxu0
    %v1509 = vpop.f32.mrb[0].mxu0
    %1510 = vdwg.mxu0
    %1511 = vmatprep.subr.bf16.mxu0 %v1345
    %1512 = vmatpush1.bf16.msra.mxu0 %v1344
    %1513 = vmatprep.subr.bf16.mxu0 %v1349
    %1514 = vmatpush1.bf16.msra.mxu0 %v1348
    %1515 = vmatprep.subr.bf16.mxu0 %v1353
    %1516 = vmatpush1.bf16.msra.mxu0 %v1352
    %1517 = vmatprep.subr.bf16.mxu0 %v1357
    %1518 = vmatpush1.bf16.msra.mxu0 %v1356
    %1519 = vmatprep.subr.bf16.mxu0 %v1361
    %1520 = vmatpush1.bf16.msra.mxu0 %v1360
    %1521 = vmatprep.subr.bf16.mxu0 %v1365
    %1522 = vmatpush1.bf16.msra.mxu0 %v1364
    %1523 = vmatprep.subr.bf16.mxu0 %v1369
    %1524 = vmatpush1.bf16.msra.mxu0 %v1368
    %1525 = vmatprep.subr.bf16.mxu0 %v1373
    %1526 = vmatpush1.bf16.msra.mxu0 %v1372
    %1527 = vmatprep.subr.bf16.mxu0 %v1377
    %1528 = vmatpush1.bf16.msra.mxu0 %v1376
    %1529 = vmatprep.subr.bf16.mxu0 %v1381
    %1530 = vmatpush1.bf16.msra.mxu0 %v1380
    %1531 = vmatprep.subr.bf16.mxu0 %v1385
    %1532 = vmatpush1.bf16.msra.mxu0 %v1384
    %1533 = vmatprep.subr.bf16.mxu0 %v1389
    %1534 = vmatpush1.bf16.msra.mxu0 %v1388
    %1535 = vmatprep.subr.bf16.mxu0 %v1393
    %1536 = vmatpush1.bf16.msra.mxu0 %v1392
    %1537 = vmatprep.subr.bf16.mxu0 %v1397
    %1538 = vmatpush1.bf16.msra.mxu0 %v1396
    %1539 = vmatprep.subr.bf16.mxu0 %v1401
    %1540 = vmatpush1.bf16.msra.mxu0 %v1400
    %1541 = vmatprep.subr.bf16.mxu0 %v1405
    %1542 = vmatpush1.bf16.msra.mxu0 %v1404
    %1543 = vmatprep.mubr.bf16.mxu0 %v1063
    %1544 = vmatmul.mubr.bf16.gmra.mrb[0].mxu0 %v1062
    %v1545 = vpop.f32.mrb[0].mxu0
    %v1546 = vadd.f32 %v1141, %v1545
    %v1547 = vpop.f32.mrb[0].mxu0
    %v1548 = vadd.f32 %v1145, %v1547
    %v1549 = vpop.f32.mrb[0].mxu0
    %v1550 = vpop.f32.mrb[0].mxu0
    %1551 = vdwg.mxu0
    %v1552 = vmul.f32 %v1505, 0.2
    %v1553 = vmul.f32 %v1507, 0.2
    %v1554 = vmul.f32 %v1546, 0.2
    %v1555 = vmul.f32 %v1548, 0.2
    %v1556 = vmax.f32 %v1505, %v1552
    %v1557 = vmax.f32 %v1507, %v1553
    %v1558 = vmax.f32 %v1546, %v1554
    %v1559 = vmax.f32 %v1548, %v1555
    %v1560 = vpack.c.bf16 %v1556, %v1556
    %v1561 = vpack.c.bf16 %v1557, %v1557
    %v1562 = vpack.c.bf16 %v1558, %v1558
    %v1563 = vpack.c.bf16 %v1559, %v1559
    %v1564 = vld [vmem:[#allocation10] sm:$0xff]
    %v1565 = vld [vmem:[#allocation10 + $0x8] sm:$0xff]
    %v1566 = vld [vmem:[#allocation10 + $0x10] sm:$0xff]
    %v1567 = vld [vmem:[#allocation10 + $0x18] sm:$0xff]
    %v1568 = vld [vmem:[#allocation10 + $0x20] sm:$0xff]
    %v1569 = vld [vmem:[#allocation10 + $0x28] sm:$0xff]
    %v1570 = vld [vmem:[#allocation10 + $0x30] sm:$0xff]
    %v1571 = vld [vmem:[#allocation10 + $0x38] sm:$0xff]
    %v1572 = vld [vmem:[#allocation10 + $0x40] sm:$0xff]
    %v1573 = vld [vmem:[#allocation10 + $0x48] sm:$0xff]
    %v1574 = vld [vmem:[#allocation10 + $0x50] sm:$0xff]
    %v1575 = vld [vmem:[#allocation10 + $0x58] sm:$0xff]
    %v1576 = vld [vmem:[#allocation10 + $0x60] sm:$0xff]
    %v1577 = vld [vmem:[#allocation10 + $0x68] sm:$0xff]
    %v1578 = vld [vmem:[#allocation10 + $0x70] sm:$0xff]
    %v1579 = vld [vmem:[#allocation10 + $0x78] sm:$0xff]
    %v1580 = vld [vmem:[#allocation10 + $0x80] sm:$0xff]
    %v1581 = vld [vmem:[#allocation10 + $0x88] sm:$0xff]
    %v1582 = vld [vmem:[#allocation10 + $0x90] sm:$0xff]
    %v1583 = vld [vmem:[#allocation10 + $0x98] sm:$0xff]
    %v1584 = vld [vmem:[#allocation10 + $0xa0] sm:$0xff]
    %v1585 = vld [vmem:[#allocation10 + $0xa8] sm:$0xff]
    %v1586 = vld [vmem:[#allocation10 + $0xb0] sm:$0xff]
    %v1587 = vld [vmem:[#allocation10 + $0xb8] sm:$0xff]
    %v1588 = vld [vmem:[#allocation10 + $0xc0] sm:$0xff]
    %v1589 = vld [vmem:[#allocation10 + $0xc8] sm:$0xff]
    %v1590 = vld [vmem:[#allocation10 + $0xd0] sm:$0xff]
    %v1591 = vld [vmem:[#allocation10 + $0xd8] sm:$0xff]
    %v1592 = vld [vmem:[#allocation10 + $0xe0] sm:$0xff]
    %v1593 = vld [vmem:[#allocation10 + $0xe8] sm:$0xff]
    %v1594 = vld [vmem:[#allocation10 + $0xf0] sm:$0xff]
    %v1595 = vld [vmem:[#allocation10 + $0xf8] sm:$0xff]
    %v1596 = vld [vmem:[#allocation10 + $0x100] sm:$0xff]
    %v1597 = vld [vmem:[#allocation10 + $0x108] sm:$0xff]
    %v1598 = vld [vmem:[#allocation10 + $0x110] sm:$0xff]
    %v1599 = vld [vmem:[#allocation10 + $0x118] sm:$0xff]
    %v1600 = vld [vmem:[#allocation10 + $0x120] sm:$0xff]
    %v1601 = vld [vmem:[#allocation10 + $0x128] sm:$0xff]
    %v1602 = vld [vmem:[#allocation10 + $0x130] sm:$0xff]
    %v1603 = vld [vmem:[#allocation10 + $0x138] sm:$0xff]
    %v1604 = vld [vmem:[#allocation10 + $0x140] sm:$0xff]
    %v1605 = vld [vmem:[#allocation10 + $0x148] sm:$0xff]
    %v1606 = vld [vmem:[#allocation10 + $0x150] sm:$0xff]
    %v1607 = vld [vmem:[#allocation10 + $0x158] sm:$0xff]
    %v1608 = vld [vmem:[#allocation10 + $0x160] sm:$0xff]
    %v1609 = vld [vmem:[#allocation10 + $0x168] sm:$0xff]
    %v1610 = vld [vmem:[#allocation10 + $0x170] sm:$0xff]
    %v1611 = vld [vmem:[#allocation10 + $0x178] sm:$0xff]
    %v1612 = vld [vmem:[#allocation10 + $0x180] sm:$0xff]
    %v1613 = vld [vmem:[#allocation10 + $0x188] sm:$0xff]
    %v1614 = vld [vmem:[#allocation10 + $0x190] sm:$0xff]
    %v1615 = vld [vmem:[#allocation10 + $0x198] sm:$0xff]
    %v1616 = vld [vmem:[#allocation10 + $0x1a0] sm:$0xff]
    %v1617 = vld [vmem:[#allocation10 + $0x1a8] sm:$0xff]
    %v1618 = vld [vmem:[#allocation10 + $0x1b0] sm:$0xff]
    %v1619 = vld [vmem:[#allocation10 + $0x1b8] sm:$0xff]
    %v1620 = vld [vmem:[#allocation10 + $0x1c0] sm:$0xff]
    %v1621 = vld [vmem:[#allocation10 + $0x1c8] sm:$0xff]
    %v1622 = vld [vmem:[#allocation10 + $0x1d0] sm:$0xff]
    %v1623 = vld [vmem:[#allocation10 + $0x1d8] sm:$0xff]
    %v1624 = vld [vmem:[#allocation10 + $0x1e0] sm:$0xff]
    %v1625 = vld [vmem:[#allocation10 + $0x1e8] sm:$0xff]
    %v1626 = vld [vmem:[#allocation10 + $0x1f0] sm:$0xff]
    %v1627 = vld [vmem:[#allocation10 + $0x1f8] sm:$0xff]
    %v1628 = vld [vmem:[#allocation10 + $0x200] sm:$0xff]
    %v1629 = vld [vmem:[#allocation10 + $0x208] sm:$0xff]
    %v1630 = vld [vmem:[#allocation10 + $0x210] sm:$0xff]
    %v1631 = vld [vmem:[#allocation10 + $0x218] sm:$0xff]
    %v1632 = vld [vmem:[#allocation10 + $0x220] sm:$0xff]
    %v1633 = vld [vmem:[#allocation10 + $0x228] sm:$0xff]
    %v1634 = vld [vmem:[#allocation10 + $0x230] sm:$0xff]
    %v1635 = vld [vmem:[#allocation10 + $0x238] sm:$0xff]
    %v1636 = vld [vmem:[#allocation10 + $0x240] sm:$0xff]
    %v1637 = vld [vmem:[#allocation10 + $0x248] sm:$0xff]
    %v1638 = vld [vmem:[#allocation10 + $0x250] sm:$0xff]
    %v1639 = vld [vmem:[#allocation10 + $0x258] sm:$0xff]
    %v1640 = vld [vmem:[#allocation10 + $0x260] sm:$0xff]
    %v1641 = vld [vmem:[#allocation10 + $0x268] sm:$0xff]
    %v1642 = vld [vmem:[#allocation10 + $0x270] sm:$0xff]
    %v1643 = vld [vmem:[#allocation10 + $0x278] sm:$0xff]
    %v1644 = vld [vmem:[#allocation10 + $0x280] sm:$0xff]
    %v1645 = vld [vmem:[#allocation10 + $0x288] sm:$0xff]
    %v1646 = vld [vmem:[#allocation10 + $0x290] sm:$0xff]
    %v1647 = vld [vmem:[#allocation10 + $0x298] sm:$0xff]
    %v1648 = vld [vmem:[#allocation10 + $0x2a0] sm:$0xff]
    %v1649 = vld [vmem:[#allocation10 + $0x2a8] sm:$0xff]
    %v1650 = vld [vmem:[#allocation10 + $0x2b0] sm:$0xff]
    %v1651 = vld [vmem:[#allocation10 + $0x2b8] sm:$0xff]
    %v1652 = vld [vmem:[#allocation10 + $0x2c0] sm:$0xff]
    %v1653 = vld [vmem:[#allocation10 + $0x2c8] sm:$0xff]
    %v1654 = vld [vmem:[#allocation10 + $0x2d0] sm:$0xff]
    %v1655 = vld [vmem:[#allocation10 + $0x2d8] sm:$0xff]
    %v1656 = vld [vmem:[#allocation10 + $0x2e0] sm:$0xff]
    %v1657 = vld [vmem:[#allocation10 + $0x2e8] sm:$0xff]
    %v1658 = vld [vmem:[#allocation10 + $0x2f0] sm:$0xff]
    %v1659 = vld [vmem:[#allocation10 + $0x2f8] sm:$0xff]
    %v1660 = vld [vmem:[#allocation10 + $0x300] sm:$0xff]
    %v1661 = vld [vmem:[#allocation10 + $0x308] sm:$0xff]
    %v1662 = vld [vmem:[#allocation10 + $0x310] sm:$0xff]
    %v1663 = vld [vmem:[#allocation10 + $0x318] sm:$0xff]
    %v1664 = vld [vmem:[#allocation10 + $0x320] sm:$0xff]
    %v1665 = vld [vmem:[#allocation10 + $0x328] sm:$0xff]
    %v1666 = vld [vmem:[#allocation10 + $0x330] sm:$0xff]
    %v1667 = vld [vmem:[#allocation10 + $0x338] sm:$0xff]
    %v1668 = vld [vmem:[#allocation10 + $0x340] sm:$0xff]
    %v1669 = vld [vmem:[#allocation10 + $0x348] sm:$0xff]
    %v1670 = vld [vmem:[#allocation10 + $0x350] sm:$0xff]
    %v1671 = vld [vmem:[#allocation10 + $0x358] sm:$0xff]
    %v1672 = vld [vmem:[#allocation10 + $0x360] sm:$0xff]
    %v1673 = vld [vmem:[#allocation10 + $0x368] sm:$0xff]
    %v1674 = vld [vmem:[#allocation10 + $0x370] sm:$0xff]
    %v1675 = vld [vmem:[#allocation10 + $0x378] sm:$0xff]
    %v1676 = vld [vmem:[#allocation10 + $0x380] sm:$0xff]
    %v1677 = vld [vmem:[#allocation10 + $0x388] sm:$0xff]
    %v1678 = vld [vmem:[#allocation10 + $0x390] sm:$0xff]
    %v1679 = vld [vmem:[#allocation10 + $0x398] sm:$0xff]
    %v1680 = vld [vmem:[#allocation10 + $0x3a0] sm:$0xff]
    %v1681 = vld [vmem:[#allocation10 + $0x3a8] sm:$0xff]
    %v1682 = vld [vmem:[#allocation10 + $0x3b0] sm:$0xff]
    %v1683 = vld [vmem:[#allocation10 + $0x3b8] sm:$0xff]
    %v1684 = vld [vmem:[#allocation10 + $0x3c0] sm:$0xff]
    %v1685 = vld [vmem:[#allocation10 + $0x3c8] sm:$0xff]
    %v1686 = vld [vmem:[#allocation10 + $0x3d0] sm:$0xff]
    %v1687 = vld [vmem:[#allocation10 + $0x3d8] sm:$0xff]
    %v1688 = vld [vmem:[#allocation10 + $0x3e0] sm:$0xff]
    %v1689 = vld [vmem:[#allocation10 + $0x3e8] sm:$0xff]
    %v1690 = vld [vmem:[#allocation10 + $0x3f0] sm:$0xff]
    %v1691 = vld [vmem:[#allocation10 + $0x3f8] sm:$0xff]
    %v1692 = vld [vmem:[#allocation10 + $0x400] sm:$0xff]
    %v1693 = vld [vmem:[#allocation10 + $0x408] sm:$0xff]
    %v1694 = vld [vmem:[#allocation10 + $0x410] sm:$0xff]
    %v1695 = vld [vmem:[#allocation10 + $0x418] sm:$0xff]
    %v1696 = vld [vmem:[#allocation10 + $0x420] sm:$0xff]
    %v1697 = vld [vmem:[#allocation10 + $0x428] sm:$0xff]
    %v1698 = vld [vmem:[#allocation10 + $0x430] sm:$0xff]
    %v1699 = vld [vmem:[#allocation10 + $0x438] sm:$0xff]
    %v1700 = vld [vmem:[#allocation10 + $0x440] sm:$0xff]
    %v1701 = vld [vmem:[#allocation10 + $0x448] sm:$0xff]
    %v1702 = vld [vmem:[#allocation10 + $0x450] sm:$0xff]
    %v1703 = vld [vmem:[#allocation10 + $0x458] sm:$0xff]
    %v1704 = vld [vmem:[#allocation10 + $0x460] sm:$0xff]
    %v1705 = vld [vmem:[#allocation10 + $0x468] sm:$0xff]
    %v1706 = vld [vmem:[#allocation10 + $0x470] sm:$0xff]
    %v1707 = vld [vmem:[#allocation10 + $0x478] sm:$0xff]
    %v1708 = vld [vmem:[#allocation10 + $0x480] sm:$0xff]
    %v1709 = vld [vmem:[#allocation10 + $0x488] sm:$0xff]
    %v1710 = vld [vmem:[#allocation10 + $0x490] sm:$0xff]
    %v1711 = vld [vmem:[#allocation10 + $0x498] sm:$0xff]
    %v1712 = vld [vmem:[#allocation10 + $0x4a0] sm:$0xff]
    %v1713 = vld [vmem:[#allocation10 + $0x4a8] sm:$0xff]
    %v1714 = vld [vmem:[#allocation10 + $0x4b0] sm:$0xff]
    %v1715 = vld [vmem:[#allocation10 + $0x4b8] sm:$0xff]
    %v1716 = vld [vmem:[#allocation10 + $0x4c0] sm:$0xff]
    %v1717 = vld [vmem:[#allocation10 + $0x4c8] sm:$0xff]
    %v1718 = vld [vmem:[#allocation10 + $0x4d0] sm:$0xff]
    %v1719 = vld [vmem:[#allocation10 + $0x4d8] sm:$0xff]
    %v1720 = vld [vmem:[#allocation10 + $0x4e0] sm:$0xff]
    %v1721 = vld [vmem:[#allocation10 + $0x4e8] sm:$0xff]
    %v1722 = vld [vmem:[#allocation10 + $0x4f0] sm:$0xff]
    %v1723 = vld [vmem:[#allocation10 + $0x4f8] sm:$0xff]
    %v1724 = vld [vmem:[#allocation10 + $0x500] sm:$0xff]
    %v1725 = vld [vmem:[#allocation10 + $0x508] sm:$0xff]
    %v1726 = vld [vmem:[#allocation10 + $0x510] sm:$0xff]
    %v1727 = vld [vmem:[#allocation10 + $0x518] sm:$0xff]
    %v1728 = vld [vmem:[#allocation10 + $0x520] sm:$0xff]
    %v1729 = vld [vmem:[#allocation10 + $0x528] sm:$0xff]
    %v1730 = vld [vmem:[#allocation10 + $0x530] sm:$0xff]
    %v1731 = vld [vmem:[#allocation10 + $0x538] sm:$0xff]
    %v1732 = vld [vmem:[#allocation10 + $0x540] sm:$0xff]
    %v1733 = vld [vmem:[#allocation10 + $0x548] sm:$0xff]
    %v1734 = vld [vmem:[#allocation10 + $0x550] sm:$0xff]
    %v1735 = vld [vmem:[#allocation10 + $0x558] sm:$0xff]
    %v1736 = vld [vmem:[#allocation10 + $0x560] sm:$0xff]
    %v1737 = vld [vmem:[#allocation10 + $0x568] sm:$0xff]
    %v1738 = vld [vmem:[#allocation10 + $0x570] sm:$0xff]
    %v1739 = vld [vmem:[#allocation10 + $0x578] sm:$0xff]
    %v1740 = vld [vmem:[#allocation10 + $0x580] sm:$0xff]
    %v1741 = vld [vmem:[#allocation10 + $0x588] sm:$0xff]
    %v1742 = vld [vmem:[#allocation10 + $0x590] sm:$0xff]
    %v1743 = vld [vmem:[#allocation10 + $0x598] sm:$0xff]
    %v1744 = vld [vmem:[#allocation10 + $0x5a0] sm:$0xff]
    %v1745 = vld [vmem:[#allocation10 + $0x5a8] sm:$0xff]
    %v1746 = vld [vmem:[#allocation10 + $0x5b0] sm:$0xff]
    %v1747 = vld [vmem:[#allocation10 + $0x5b8] sm:$0xff]
    %v1748 = vld [vmem:[#allocation10 + $0x5c0] sm:$0xff]
    %v1749 = vld [vmem:[#allocation10 + $0x5c8] sm:$0xff]
    %v1750 = vld [vmem:[#allocation10 + $0x5d0] sm:$0xff]
    %v1751 = vld [vmem:[#allocation10 + $0x5d8] sm:$0xff]
    %v1752 = vld [vmem:[#allocation10 + $0x5e0] sm:$0xff]
    %v1753 = vld [vmem:[#allocation10 + $0x5e8] sm:$0xff]
    %v1754 = vld [vmem:[#allocation10 + $0x5f0] sm:$0xff]
    %v1755 = vld [vmem:[#allocation10 + $0x5f8] sm:$0xff]
    %v1756 = vld [vmem:[#allocation10 + $0x600] sm:$0xff]
    %v1757 = vld [vmem:[#allocation10 + $0x608] sm:$0xff]
    %v1758 = vld [vmem:[#allocation10 + $0x610] sm:$0xff]
    %v1759 = vld [vmem:[#allocation10 + $0x618] sm:$0xff]
    %v1760 = vld [vmem:[#allocation10 + $0x620] sm:$0xff]
    %v1761 = vld [vmem:[#allocation10 + $0x628] sm:$0xff]
    %v1762 = vld [vmem:[#allocation10 + $0x630] sm:$0xff]
    %v1763 = vld [vmem:[#allocation10 + $0x638] sm:$0xff]
    %v1764 = vld [vmem:[#allocation10 + $0x640] sm:$0xff]
    %v1765 = vld [vmem:[#allocation10 + $0x648] sm:$0xff]
    %v1766 = vld [vmem:[#allocation10 + $0x650] sm:$0xff]
    %v1767 = vld [vmem:[#allocation10 + $0x658] sm:$0xff]
    %v1768 = vld [vmem:[#allocation10 + $0x660] sm:$0xff]
    %v1769 = vld [vmem:[#allocation10 + $0x668] sm:$0xff]
    %v1770 = vld [vmem:[#allocation10 + $0x670] sm:$0xff]
    %v1771 = vld [vmem:[#allocation10 + $0x678] sm:$0xff]
    %v1772 = vld [vmem:[#allocation10 + $0x680] sm:$0xff]
    %v1773 = vld [vmem:[#allocation10 + $0x688] sm:$0xff]
    %v1774 = vld [vmem:[#allocation10 + $0x690] sm:$0xff]
    %v1775 = vld [vmem:[#allocation10 + $0x698] sm:$0xff]
    %v1776 = vld [vmem:[#allocation10 + $0x6a0] sm:$0xff]
    %v1777 = vld [vmem:[#allocation10 + $0x6a8] sm:$0xff]
    %v1778 = vld [vmem:[#allocation10 + $0x6b0] sm:$0xff]
    %v1779 = vld [vmem:[#allocation10 + $0x6b8] sm:$0xff]
    %v1780 = vld [vmem:[#allocation10 + $0x6c0] sm:$0xff]
    %v1781 = vld [vmem:[#allocation10 + $0x6c8] sm:$0xff]
    %v1782 = vld [vmem:[#allocation10 + $0x6d0] sm:$0xff]
    %v1783 = vld [vmem:[#allocation10 + $0x6d8] sm:$0xff]
    %v1784 = vld [vmem:[#allocation10 + $0x6e0] sm:$0xff]
    %v1785 = vld [vmem:[#allocation10 + $0x6e8] sm:$0xff]
    %v1786 = vld [vmem:[#allocation10 + $0x6f0] sm:$0xff]
    %v1787 = vld [vmem:[#allocation10 + $0x6f8] sm:$0xff]
    %v1788 = vld [vmem:[#allocation10 + $0x700] sm:$0xff]
    %v1789 = vld [vmem:[#allocation10 + $0x708] sm:$0xff]
    %v1790 = vld [vmem:[#allocation10 + $0x710] sm:$0xff]
    %v1791 = vld [vmem:[#allocation10 + $0x718] sm:$0xff]
    %v1792 = vld [vmem:[#allocation10 + $0x720] sm:$0xff]
    %v1793 = vld [vmem:[#allocation10 + $0x728] sm:$0xff]
    %v1794 = vld [vmem:[#allocation10 + $0x730] sm:$0xff]
    %v1795 = vld [vmem:[#allocation10 + $0x738] sm:$0xff]
    %v1796 = vld [vmem:[#allocation10 + $0x740] sm:$0xff]
    %v1797 = vld [vmem:[#allocation10 + $0x748] sm:$0xff]
    %v1798 = vld [vmem:[#allocation10 + $0x750] sm:$0xff]
    %v1799 = vld [vmem:[#allocation10 + $0x758] sm:$0xff]
    %v1800 = vld [vmem:[#allocation10 + $0x760] sm:$0xff]
    %v1801 = vld [vmem:[#allocation10 + $0x768] sm:$0xff]
    %v1802 = vld [vmem:[#allocation10 + $0x770] sm:$0xff]
    %v1803 = vld [vmem:[#allocation10 + $0x778] sm:$0xff]
    %v1804 = vld [vmem:[#allocation10 + $0x780] sm:$0xff]
    %v1805 = vld [vmem:[#allocation10 + $0x788] sm:$0xff]
    %v1806 = vld [vmem:[#allocation10 + $0x790] sm:$0xff]
    %v1807 = vld [vmem:[#allocation10 + $0x798] sm:$0xff]
    %v1808 = vld [vmem:[#allocation10 + $0x7a0] sm:$0xff]
    %v1809 = vld [vmem:[#allocation10 + $0x7a8] sm:$0xff]
    %v1810 = vld [vmem:[#allocation10 + $0x7b0] sm:$0xff]
    %v1811 = vld [vmem:[#allocation10 + $0x7b8] sm:$0xff]
    %v1812 = vld [vmem:[#allocation10 + $0x7c0] sm:$0xff]
    %v1813 = vld [vmem:[#allocation10 + $0x7c8] sm:$0xff]
    %v1814 = vld [vmem:[#allocation10 + $0x7d0] sm:$0xff]
    %v1815 = vld [vmem:[#allocation10 + $0x7d8] sm:$0xff]
    %v1816 = vld [vmem:[#allocation10 + $0x7e0] sm:$0xff]
    %v1817 = vld [vmem:[#allocation10 + $0x7e8] sm:$0xff]
    %v1818 = vld [vmem:[#allocation10 + $0x7f0] sm:$0xff]
    %v1819 = vld [vmem:[#allocation10 + $0x7f8] sm:$0xff]
    %v1820 = vld [vmem:[%s6] sm:$0xff]
    %v1822 = vlaneseq
    %v1823 = vshrl.u32 %v1822, 7
    %v1824 = vsub.s32 0, %v1823
    %v1825 = vrot.slane %v1820, %v1824
    %v1826 = vlaneseq
    %v1827 = vshrl.u32 %v1826, 7
    %v1828 = vsub.s32 1, %v1827
    %v1829 = vrot.slane %v1820, %v1828
    %v1830 = vlaneseq
    %v1831 = vshrl.u32 %v1830, 7
    %v1832 = vsub.s32 2, %v1831
    %v1833 = vrot.slane %v1820, %v1832
    %v1834 = vlaneseq
    %v1835 = vshrl.u32 %v1834, 7
    %v1836 = vsub.s32 3, %v1835
    %v1837 = vrot.slane %v1820, %v1836
    %v1838 = vlaneseq
    %v1839 = vshrl.u32 %v1838, 7
    %v1840 = vsub.s32 4, %v1839
    %v1841 = vrot.slane %v1820, %v1840
    %v1842 = vlaneseq
    %v1843 = vshrl.u32 %v1842, 7
    %v1844 = vsub.s32 5, %v1843
    %v1845 = vrot.slane %v1820, %v1844
    %v1846 = vlaneseq
    %v1847 = vshrl.u32 %v1846, 7
    %v1848 = vsub.s32 6, %v1847
    %v1849 = vrot.slane %v1820, %v1848
    %v1850 = vlaneseq
    %v1851 = vshrl.u32 %v1850, 7
    %v1852 = vsub.s32 7, %v1851
    %v1853 = vrot.slane %v1820, %v1852
    %v2118 = vunpack.c.l.b16 %v1564
    %v2119 = vunpack.c.h.b16 %v1564
    %v2120 = vunpack.c.l.b16 %v1565
    %v2121 = vunpack.c.h.b16 %v1565
    %v2122 = vunpack.c.l.b16 %v1566
    %v2123 = vunpack.c.h.b16 %v1566
    %v2124 = vunpack.c.l.b16 %v1567
    %v2125 = vunpack.c.h.b16 %v1567
    %v2126 = vunpack.c.l.b16 %v1568
    %v2127 = vunpack.c.h.b16 %v1568
    %v2128 = vunpack.c.l.b16 %v1569
    %v2129 = vunpack.c.h.b16 %v1569
    %v2130 = vunpack.c.l.b16 %v1570
    %v2131 = vunpack.c.h.b16 %v1570
    %v2132 = vunpack.c.l.b16 %v1571
    %v2133 = vunpack.c.h.b16 %v1571
    %v2134 = vunpack.c.l.b16 %v1572
    %v2135 = vunpack.c.h.b16 %v1572
    %v2136 = vunpack.c.l.b16 %v1573
    %v2137 = vunpack.c.h.b16 %v1573
    %v2138 = vunpack.c.l.b16 %v1574
    %v2139 = vunpack.c.h.b16 %v1574
    %v2140 = vunpack.c.l.b16 %v1575
    %v2141 = vunpack.c.h.b16 %v1575
    %v2142 = vunpack.c.l.b16 %v1576
    %v2143 = vunpack.c.h.b16 %v1576
    %v2144 = vunpack.c.l.b16 %v1577
    %v2145 = vunpack.c.h.b16 %v1577
    %v2146 = vunpack.c.l.b16 %v1578
    %v2147 = vunpack.c.h.b16 %v1578
    %v2148 = vunpack.c.l.b16 %v1579
    %v2149 = vunpack.c.h.b16 %v1579
    %v2150 = vunpack.c.l.b16 %v1580
    %v2151 = vunpack.c.h.b16 %v1580
    %v2152 = vunpack.c.l.b16 %v1581
    %v2153 = vunpack.c.h.b16 %v1581
    %v2154 = vunpack.c.l.b16 %v1582
    %v2155 = vunpack.c.h.b16 %v1582
    %v2156 = vunpack.c.l.b16 %v1583
    %v2157 = vunpack.c.h.b16 %v1583
    %v2158 = vunpack.c.l.b16 %v1584
    %v2159 = vunpack.c.h.b16 %v1584
    %v2160 = vunpack.c.l.b16 %v1585
    %v2161 = vunpack.c.h.b16 %v1585
    %v2162 = vunpack.c.l.b16 %v1586
    %v2163 = vunpack.c.h.b16 %v1586
    %v2164 = vunpack.c.l.b16 %v1587
    %v2165 = vunpack.c.h.b16 %v1587
    %v2166 = vunpack.c.l.b16 %v1588
    %v2167 = vunpack.c.h.b16 %v1588
    %v2168 = vunpack.c.l.b16 %v1589
    %v2169 = vunpack.c.h.b16 %v1589
    %v2170 = vunpack.c.l.b16 %v1590
    %v2171 = vunpack.c.h.b16 %v1590
    %v2172 = vunpack.c.l.b16 %v1591
    %v2173 = vunpack.c.h.b16 %v1591
    %v2174 = vunpack.c.l.b16 %v1592
    %v2175 = vunpack.c.h.b16 %v1592
    %v2176 = vunpack.c.l.b16 %v1593
    %v2177 = vunpack.c.h.b16 %v1593
    %v2178 = vunpack.c.l.b16 %v1594
    %v2179 = vunpack.c.h.b16 %v1594
    %v2180 = vunpack.c.l.b16 %v1595
    %v2181 = vunpack.c.h.b16 %v1595
    %v2182 = vunpack.c.l.b16 %v1596
    %v2183 = vunpack.c.h.b16 %v1596
    %v2184 = vunpack.c.l.b16 %v1597
    %v2185 = vunpack.c.h.b16 %v1597
    %v2186 = vunpack.c.l.b16 %v1598
    %v2187 = vunpack.c.h.b16 %v1598
    %v2188 = vunpack.c.l.b16 %v1599
    %v2189 = vunpack.c.h.b16 %v1599
    %v2190 = vunpack.c.l.b16 %v1600
    %v2191 = vunpack.c.h.b16 %v1600
    %v2192 = vunpack.c.l.b16 %v1601
    %v2193 = vunpack.c.h.b16 %v1601
    %v2194 = vunpack.c.l.b16 %v1602
    %v2195 = vunpack.c.h.b16 %v1602
    %v2196 = vunpack.c.l.b16 %v1603
    %v2197 = vunpack.c.h.b16 %v1603
    %v2198 = vunpack.c.l.b16 %v1604
    %v2199 = vunpack.c.h.b16 %v1604
    %v2200 = vunpack.c.l.b16 %v1605
    %v2201 = vunpack.c.h.b16 %v1605
    %v2202 = vunpack.c.l.b16 %v1606
    %v2203 = vunpack.c.h.b16 %v1606
    %v2204 = vunpack.c.l.b16 %v1607
    %v2205 = vunpack.c.h.b16 %v1607
    %v2206 = vunpack.c.l.b16 %v1608
    %v2207 = vunpack.c.h.b16 %v1608
    %v2208 = vunpack.c.l.b16 %v1609
    %v2209 = vunpack.c.h.b16 %v1609
    %v2210 = vunpack.c.l.b16 %v1610
    %v2211 = vunpack.c.h.b16 %v1610
    %v2212 = vunpack.c.l.b16 %v1611
    %v2213 = vunpack.c.h.b16 %v1611
    %v2214 = vunpack.c.l.b16 %v1612
    %v2215 = vunpack.c.h.b16 %v1612
    %v2216 = vunpack.c.l.b16 %v1613
    %v2217 = vunpack.c.h.b16 %v1613
    %v2218 = vunpack.c.l.b16 %v1614
    %v2219 = vunpack.c.h.b16 %v1614
    %v2220 = vunpack.c.l.b16 %v1615
    %v2221 = vunpack.c.h.b16 %v1615
    %v2222 = vunpack.c.l.b16 %v1616
    %v2223 = vunpack.c.h.b16 %v1616
    %v2224 = vunpack.c.l.b16 %v1617
    %v2225 = vunpack.c.h.b16 %v1617
    %v2226 = vunpack.c.l.b16 %v1618
    %v2227 = vunpack.c.h.b16 %v1618
    %v2228 = vunpack.c.l.b16 %v1619
    %v2229 = vunpack.c.h.b16 %v1619
    %v2230 = vunpack.c.l.b16 %v1620
    %v2231 = vunpack.c.h.b16 %v1620
    %v2232 = vunpack.c.l.b16 %v1621
    %v2233 = vunpack.c.h.b16 %v1621
    %v2234 = vunpack.c.l.b16 %v1622
    %v2235 = vunpack.c.h.b16 %v1622
    %v2236 = vunpack.c.l.b16 %v1623
    %v2237 = vunpack.c.h.b16 %v1623
    %v2238 = vunpack.c.l.b16 %v1624
    %v2239 = vunpack.c.h.b16 %v1624
    %v2240 = vunpack.c.l.b16 %v1625
    %v2241 = vunpack.c.h.b16 %v1625
    %v2242 = vunpack.c.l.b16 %v1626
    %v2243 = vunpack.c.h.b16 %v1626
    %v2244 = vunpack.c.l.b16 %v1627
    %v2245 = vunpack.c.h.b16 %v1627
    %v2246 = vunpack.c.l.b16 %v1628
    %v2247 = vunpack.c.h.b16 %v1628
    %v2248 = vunpack.c.l.b16 %v1629
    %v2249 = vunpack.c.h.b16 %v1629
    %v2250 = vunpack.c.l.b16 %v1630
    %v2251 = vunpack.c.h.b16 %v1630
    %v2252 = vunpack.c.l.b16 %v1631
    %v2253 = vunpack.c.h.b16 %v1631
    %v2254 = vunpack.c.l.b16 %v1632
    %v2255 = vunpack.c.h.b16 %v1632
    %v2256 = vunpack.c.l.b16 %v1633
    %v2257 = vunpack.c.h.b16 %v1633
    %v2258 = vunpack.c.l.b16 %v1634
    %v2259 = vunpack.c.h.b16 %v1634
    %v2260 = vunpack.c.l.b16 %v1635
    %v2261 = vunpack.c.h.b16 %v1635
    %v2262 = vunpack.c.l.b16 %v1636
    %v2263 = vunpack.c.h.b16 %v1636
    %v2264 = vunpack.c.l.b16 %v1637
    %v2265 = vunpack.c.h.b16 %v1637
    %v2266 = vunpack.c.l.b16 %v1638
    %v2267 = vunpack.c.h.b16 %v1638
    %v2268 = vunpack.c.l.b16 %v1639
    %v2269 = vunpack.c.h.b16 %v1639
    %v2270 = vunpack.c.l.b16 %v1640
    %v2271 = vunpack.c.h.b16 %v1640
    %v2272 = vunpack.c.l.b16 %v1641
    %v2273 = vunpack.c.h.b16 %v1641
    %v2274 = vunpack.c.l.b16 %v1642
    %v2275 = vunpack.c.h.b16 %v1642
    %v2276 = vunpack.c.l.b16 %v1643
    %v2277 = vunpack.c.h.b16 %v1643
    %v2278 = vunpack.c.l.b16 %v1644
    %v2279 = vunpack.c.h.b16 %v1644
    %v2280 = vunpack.c.l.b16 %v1645
    %v2281 = vunpack.c.h.b16 %v1645
    %v2282 = vunpack.c.l.b16 %v1646
    %v2283 = vunpack.c.h.b16 %v1646
    %v2284 = vunpack.c.l.b16 %v1647
    %v2285 = vunpack.c.h.b16 %v1647
    %v2286 = vunpack.c.l.b16 %v1648
    %v2287 = vunpack.c.h.b16 %v1648
    %v2288 = vunpack.c.l.b16 %v1649
    %v2289 = vunpack.c.h.b16 %v1649
    %v2290 = vunpack.c.l.b16 %v1650
    %v2291 = vunpack.c.h.b16 %v1650
    %v2292 = vunpack.c.l.b16 %v1651
    %v2293 = vunpack.c.h.b16 %v1651
    %v2294 = vunpack.c.l.b16 %v1652
    %v2295 = vunpack.c.h.b16 %v1652
    %v2296 = vunpack.c.l.b16 %v1653
    %v2297 = vunpack.c.h.b16 %v1653
    %v2298 = vunpack.c.l.b16 %v1654
    %v2299 = vunpack.c.h.b16 %v1654
    %v2300 = vunpack.c.l.b16 %v1655
    %v2301 = vunpack.c.h.b16 %v1655
    %v2302 = vunpack.c.l.b16 %v1656
    %v2303 = vunpack.c.h.b16 %v1656
    %v2304 = vunpack.c.l.b16 %v1657
    %v2305 = vunpack.c.h.b16 %v1657
    %v2306 = vunpack.c.l.b16 %v1658
    %v2307 = vunpack.c.h.b16 %v1658
    %v2308 = vunpack.c.l.b16 %v1659
    %v2309 = vunpack.c.h.b16 %v1659
    %v2310 = vunpack.c.l.b16 %v1660
    %v2311 = vunpack.c.h.b16 %v1660
    %v2312 = vunpack.c.l.b16 %v1661
    %v2313 = vunpack.c.h.b16 %v1661
    %v2314 = vunpack.c.l.b16 %v1662
    %v2315 = vunpack.c.h.b16 %v1662
    %v2316 = vunpack.c.l.b16 %v1663
    %v2317 = vunpack.c.h.b16 %v1663
    %v2318 = vunpack.c.l.b16 %v1664
    %v2319 = vunpack.c.h.b16 %v1664
    %v2320 = vunpack.c.l.b16 %v1665
    %v2321 = vunpack.c.h.b16 %v1665
    %v2322 = vunpack.c.l.b16 %v1666
    %v2323 = vunpack.c.h.b16 %v1666
    %v2324 = vunpack.c.l.b16 %v1667
    %v2325 = vunpack.c.h.b16 %v1667
    %v2326 = vunpack.c.l.b16 %v1668
    %v2327 = vunpack.c.h.b16 %v1668
    %v2328 = vunpack.c.l.b16 %v1669
    %v2329 = vunpack.c.h.b16 %v1669
    %v2330 = vunpack.c.l.b16 %v1670
    %v2331 = vunpack.c.h.b16 %v1670
    %v2332 = vunpack.c.l.b16 %v1671
    %v2333 = vunpack.c.h.b16 %v1671
    %v2334 = vunpack.c.l.b16 %v1672
    %v2335 = vunpack.c.h.b16 %v1672
    %v2336 = vunpack.c.l.b16 %v1673
    %v2337 = vunpack.c.h.b16 %v1673
    %v2338 = vunpack.c.l.b16 %v1674
    %v2339 = vunpack.c.h.b16 %v1674
    %v2340 = vunpack.c.l.b16 %v1675
    %v2341 = vunpack.c.h.b16 %v1675
    %v2342 = vunpack.c.l.b16 %v1676
    %v2343 = vunpack.c.h.b16 %v1676
    %v2344 = vunpack.c.l.b16 %v1677
    %v2345 = vunpack.c.h.b16 %v1677
    %v2346 = vunpack.c.l.b16 %v1678
    %v2347 = vunpack.c.h.b16 %v1678
    %v2348 = vunpack.c.l.b16 %v1679
    %v2349 = vunpack.c.h.b16 %v1679
    %v2350 = vunpack.c.l.b16 %v1680
    %v2351 = vunpack.c.h.b16 %v1680
    %v2352 = vunpack.c.l.b16 %v1681
    %v2353 = vunpack.c.h.b16 %v1681
    %v2354 = vunpack.c.l.b16 %v1682
    %v2355 = vunpack.c.h.b16 %v1682
    %v2356 = vunpack.c.l.b16 %v1683
    %v2357 = vunpack.c.h.b16 %v1683
    %v2358 = vunpack.c.l.b16 %v1684
    %v2359 = vunpack.c.h.b16 %v1684
    %v2360 = vunpack.c.l.b16 %v1685
    %v2361 = vunpack.c.h.b16 %v1685
    %v2362 = vunpack.c.l.b16 %v1686
    %v2363 = vunpack.c.h.b16 %v1686
    %v2364 = vunpack.c.l.b16 %v1687
    %v2365 = vunpack.c.h.b16 %v1687
    %v2366 = vunpack.c.l.b16 %v1688
    %v2367 = vunpack.c.h.b16 %v1688
    %v2368 = vunpack.c.l.b16 %v1689
    %v2369 = vunpack.c.h.b16 %v1689
    %v2370 = vunpack.c.l.b16 %v1690
    %v2371 = vunpack.c.h.b16 %v1690
    %v2372 = vunpack.c.l.b16 %v1691
    %v2373 = vunpack.c.h.b16 %v1691
    %v2374 = vunpack.c.l.b16 %v1692
    %v2375 = vunpack.c.h.b16 %v1692
    %v2376 = vunpack.c.l.b16 %v1693
    %v2377 = vunpack.c.h.b16 %v1693
    %v2378 = vunpack.c.l.b16 %v1694
    %v2379 = vunpack.c.h.b16 %v1694
    %v2380 = vunpack.c.l.b16 %v1695
    %v2381 = vunpack.c.h.b16 %v1695
    %v2382 = vunpack.c.l.b16 %v1696
    %v2383 = vunpack.c.h.b16 %v1696
    %v2384 = vunpack.c.l.b16 %v1697
    %v2385 = vunpack.c.h.b16 %v1697
    %v2386 = vunpack.c.l.b16 %v1698
    %v2387 = vunpack.c.h.b16 %v1698
    %v2388 = vunpack.c.l.b16 %v1699
    %v2389 = vunpack.c.h.b16 %v1699
    %v2390 = vunpack.c.l.b16 %v1700
    %v2391 = vunpack.c.h.b16 %v1700
    %v2392 = vunpack.c.l.b16 %v1701
    %v2393 = vunpack.c.h.b16 %v1701
    %v2394 = vunpack.c.l.b16 %v1702
    %v2395 = vunpack.c.h.b16 %v1702
    %v2396 = vunpack.c.l.b16 %v1703
    %v2397 = vunpack.c.h.b16 %v1703
    %v2398 = vunpack.c.l.b16 %v1704
    %v2399 = vunpack.c.h.b16 %v1704
    %v2400 = vunpack.c.l.b16 %v1705
    %v2401 = vunpack.c.h.b16 %v1705
    %v2402 = vunpack.c.l.b16 %v1706
    %v2403 = vunpack.c.h.b16 %v1706
    %v2404 = vunpack.c.l.b16 %v1707
    %v2405 = vunpack.c.h.b16 %v1707
    %v2406 = vunpack.c.l.b16 %v1708
    %v2407 = vunpack.c.h.b16 %v1708
    %v2408 = vunpack.c.l.b16 %v1709
    %v2409 = vunpack.c.h.b16 %v1709
    %v2410 = vunpack.c.l.b16 %v1710
    %v2411 = vunpack.c.h.b16 %v1710
    %v2412 = vunpack.c.l.b16 %v1711
    %v2413 = vunpack.c.h.b16 %v1711
    %v2414 = vunpack.c.l.b16 %v1712
    %v2415 = vunpack.c.h.b16 %v1712
    %v2416 = vunpack.c.l.b16 %v1713
    %v2417 = vunpack.c.h.b16 %v1713
    %v2418 = vunpack.c.l.b16 %v1714
    %v2419 = vunpack.c.h.b16 %v1714
    %v2420 = vunpack.c.l.b16 %v1715
    %v2421 = vunpack.c.h.b16 %v1715
    %v2422 = vunpack.c.l.b16 %v1716
    %v2423 = vunpack.c.h.b16 %v1716
    %v2424 = vunpack.c.l.b16 %v1717
    %v2425 = vunpack.c.h.b16 %v1717
    %v2426 = vunpack.c.l.b16 %v1718
    %v2427 = vunpack.c.h.b16 %v1718
    %v2428 = vunpack.c.l.b16 %v1719
    %v2429 = vunpack.c.h.b16 %v1719
    %v2430 = vunpack.c.l.b16 %v1720
    %v2431 = vunpack.c.h.b16 %v1720
    %v2432 = vunpack.c.l.b16 %v1721
    %v2433 = vunpack.c.h.b16 %v1721
    %v2434 = vunpack.c.l.b16 %v1722
    %v2435 = vunpack.c.h.b16 %v1722
    %v2436 = vunpack.c.l.b16 %v1723
    %v2437 = vunpack.c.h.b16 %v1723
    %v2438 = vunpack.c.l.b16 %v1724
    %v2439 = vunpack.c.h.b16 %v1724
    %v2440 = vunpack.c.l.b16 %v1725
    %v2441 = vunpack.c.h.b16 %v1725
    %v2442 = vunpack.c.l.b16 %v1726
    %v2443 = vunpack.c.h.b16 %v1726
    %v2444 = vunpack.c.l.b16 %v1727
    %v2445 = vunpack.c.h.b16 %v1727
    %v2446 = vunpack.c.l.b16 %v1728
    %v2447 = vunpack.c.h.b16 %v1728
    %v2448 = vunpack.c.l.b16 %v1729
    %v2449 = vunpack.c.h.b16 %v1729
    %v2450 = vunpack.c.l.b16 %v1730
    %v2451 = vunpack.c.h.b16 %v1730
    %v2452 = vunpack.c.l.b16 %v1731
    %v2453 = vunpack.c.h.b16 %v1731
    %v2454 = vunpack.c.l.b16 %v1732
    %v2455 = vunpack.c.h.b16 %v1732
    %v2456 = vunpack.c.l.b16 %v1733
    %v2457 = vunpack.c.h.b16 %v1733
    %v2458 = vunpack.c.l.b16 %v1734
    %v2459 = vunpack.c.h.b16 %v1734
    %v2460 = vunpack.c.l.b16 %v1735
    %v2461 = vunpack.c.h.b16 %v1735
    %v2462 = vunpack.c.l.b16 %v1736
    %v2463 = vunpack.c.h.b16 %v1736
    %v2464 = vunpack.c.l.b16 %v1737
    %v2465 = vunpack.c.h.b16 %v1737
    %v2466 = vunpack.c.l.b16 %v1738
    %v2467 = vunpack.c.h.b16 %v1738
    %v2468 = vunpack.c.l.b16 %v1739
    %v2469 = vunpack.c.h.b16 %v1739
    %v2470 = vunpack.c.l.b16 %v1740
    %v2471 = vunpack.c.h.b16 %v1740
    %v2472 = vunpack.c.l.b16 %v1741
    %v2473 = vunpack.c.h.b16 %v1741
    %v2474 = vunpack.c.l.b16 %v1742
    %v2475 = vunpack.c.h.b16 %v1742
    %v2476 = vunpack.c.l.b16 %v1743
    %v2477 = vunpack.c.h.b16 %v1743
    %v2478 = vunpack.c.l.b16 %v1744
    %v2479 = vunpack.c.h.b16 %v1744
    %v2480 = vunpack.c.l.b16 %v1745
    %v2481 = vunpack.c.h.b16 %v1745
    %v2482 = vunpack.c.l.b16 %v1746
    %v2483 = vunpack.c.h.b16 %v1746
    %v2484 = vunpack.c.l.b16 %v1747
    %v2485 = vunpack.c.h.b16 %v1747
    %v2486 = vunpack.c.l.b16 %v1748
    %v2487 = vunpack.c.h.b16 %v1748
    %v2488 = vunpack.c.l.b16 %v1749
    %v2489 = vunpack.c.h.b16 %v1749
    %v2490 = vunpack.c.l.b16 %v1750
    %v2491 = vunpack.c.h.b16 %v1750
    %v2492 = vunpack.c.l.b16 %v1751
    %v2493 = vunpack.c.h.b16 %v1751
    %v2494 = vunpack.c.l.b16 %v1752
    %v2495 = vunpack.c.h.b16 %v1752
    %v2496 = vunpack.c.l.b16 %v1753
    %v2497 = vunpack.c.h.b16 %v1753
    %v2498 = vunpack.c.l.b16 %v1754
    %v2499 = vunpack.c.h.b16 %v1754
    %v2500 = vunpack.c.l.b16 %v1755
    %v2501 = vunpack.c.h.b16 %v1755
    %v2502 = vunpack.c.l.b16 %v1756
    %v2503 = vunpack.c.h.b16 %v1756
    %v2504 = vunpack.c.l.b16 %v1757
    %v2505 = vunpack.c.h.b16 %v1757
    %v2506 = vunpack.c.l.b16 %v1758
    %v2507 = vunpack.c.h.b16 %v1758
    %v2508 = vunpack.c.l.b16 %v1759
    %v2509 = vunpack.c.h.b16 %v1759
    %v2510 = vunpack.c.l.b16 %v1760
    %v2511 = vunpack.c.h.b16 %v1760
    %v2512 = vunpack.c.l.b16 %v1761
    %v2513 = vunpack.c.h.b16 %v1761
    %v2514 = vunpack.c.l.b16 %v1762
    %v2515 = vunpack.c.h.b16 %v1762
    %v2516 = vunpack.c.l.b16 %v1763
    %v2517 = vunpack.c.h.b16 %v1763
    %v2518 = vunpack.c.l.b16 %v1764
    %v2519 = vunpack.c.h.b16 %v1764
    %v2520 = vunpack.c.l.b16 %v1765
    %v2521 = vunpack.c.h.b16 %v1765
    %v2522 = vunpack.c.l.b16 %v1766
    %v2523 = vunpack.c.h.b16 %v1766
    %v2524 = vunpack.c.l.b16 %v1767
    %v2525 = vunpack.c.h.b16 %v1767
    %v2526 = vunpack.c.l.b16 %v1768
    %v2527 = vunpack.c.h.b16 %v1768
    %v2528 = vunpack.c.l.b16 %v1769
    %v2529 = vunpack.c.h.b16 %v1769
    %v2530 = vunpack.c.l.b16 %v1770
    %v2531 = vunpack.c.h.b16 %v1770
    %v2532 = vunpack.c.l.b16 %v1771
    %v2533 = vunpack.c.h.b16 %v1771
    %v2534 = vunpack.c.l.b16 %v1772
    %v2535 = vunpack.c.h.b16 %v1772
    %v2536 = vunpack.c.l.b16 %v1773
    %v2537 = vunpack.c.h.b16 %v1773
    %v2538 = vunpack.c.l.b16 %v1774
    %v2539 = vunpack.c.h.b16 %v1774
    %v2540 = vunpack.c.l.b16 %v1775
    %v2541 = vunpack.c.h.b16 %v1775
    %v2542 = vunpack.c.l.b16 %v1776
    %v2543 = vunpack.c.h.b16 %v1776
    %v2544 = vunpack.c.l.b16 %v1777
    %v2545 = vunpack.c.h.b16 %v1777
    %v2546 = vunpack.c.l.b16 %v1778
    %v2547 = vunpack.c.h.b16 %v1778
    %v2548 = vunpack.c.l.b16 %v1779
    %v2549 = vunpack.c.h.b16 %v1779
    %v2550 = vunpack.c.l.b16 %v1780
    %v2551 = vunpack.c.h.b16 %v1780
    %v2552 = vunpack.c.l.b16 %v1781
    %v2553 = vunpack.c.h.b16 %v1781
    %v2554 = vunpack.c.l.b16 %v1782
    %v2555 = vunpack.c.h.b16 %v1782
    %v2556 = vunpack.c.l.b16 %v1783
    %v2557 = vunpack.c.h.b16 %v1783
    %v2558 = vunpack.c.l.b16 %v1784
    %v2559 = vunpack.c.h.b16 %v1784
    %v2560 = vunpack.c.l.b16 %v1785
    %v2561 = vunpack.c.h.b16 %v1785
    %v2562 = vunpack.c.l.b16 %v1786
    %v2563 = vunpack.c.h.b16 %v1786
    %v2564 = vunpack.c.l.b16 %v1787
    %v2565 = vunpack.c.h.b16 %v1787
    %v2566 = vunpack.c.l.b16 %v1788
    %v2567 = vunpack.c.h.b16 %v1788
    %v2568 = vunpack.c.l.b16 %v1789
    %v2569 = vunpack.c.h.b16 %v1789
    %v2570 = vunpack.c.l.b16 %v1790
    %v2571 = vunpack.c.h.b16 %v1790
    %v2572 = vunpack.c.l.b16 %v1791
    %v2573 = vunpack.c.h.b16 %v1791
    %v2574 = vunpack.c.l.b16 %v1792
    %v2575 = vunpack.c.h.b16 %v1792
    %v2576 = vunpack.c.l.b16 %v1793
    %v2577 = vunpack.c.h.b16 %v1793
    %v2578 = vunpack.c.l.b16 %v1794
    %v2579 = vunpack.c.h.b16 %v1794
    %v2580 = vunpack.c.l.b16 %v1795
    %v2581 = vunpack.c.h.b16 %v1795
    %v2582 = vunpack.c.l.b16 %v1796
    %v2583 = vunpack.c.h.b16 %v1796
    %v2584 = vunpack.c.l.b16 %v1797
    %v2585 = vunpack.c.h.b16 %v1797
    %v2586 = vunpack.c.l.b16 %v1798
    %v2587 = vunpack.c.h.b16 %v1798
    %v2588 = vunpack.c.l.b16 %v1799
    %v2589 = vunpack.c.h.b16 %v1799
    %v2590 = vunpack.c.l.b16 %v1800
    %v2591 = vunpack.c.h.b16 %v1800
    %v2592 = vunpack.c.l.b16 %v1801
    %v2593 = vunpack.c.h.b16 %v1801
    %v2594 = vunpack.c.l.b16 %v1802
    %v2595 = vunpack.c.h.b16 %v1802
    %v2596 = vunpack.c.l.b16 %v1803
    %v2597 = vunpack.c.h.b16 %v1803
    %v2598 = vunpack.c.l.b16 %v1804
    %v2599 = vunpack.c.h.b16 %v1804
    %v2600 = vunpack.c.l.b16 %v1805
    %v2601 = vunpack.c.h.b16 %v1805
    %v2602 = vunpack.c.l.b16 %v1806
    %v2603 = vunpack.c.h.b16 %v1806
    %v2604 = vunpack.c.l.b16 %v1807
    %v2605 = vunpack.c.h.b16 %v1807
    %v2606 = vunpack.c.l.b16 %v1808
    %v2607 = vunpack.c.h.b16 %v1808
    %v2608 = vunpack.c.l.b16 %v1809
    %v2609 = vunpack.c.h.b16 %v1809
    %v2610 = vunpack.c.l.b16 %v1810
    %v2611 = vunpack.c.h.b16 %v1810
    %v2612 = vunpack.c.l.b16 %v1811
    %v2613 = vunpack.c.h.b16 %v1811
    %v2614 = vunpack.c.l.b16 %v1812
    %v2615 = vunpack.c.h.b16 %v1812
    %v2616 = vunpack.c.l.b16 %v1813
    %v2617 = vunpack.c.h.b16 %v1813
    %v2618 = vunpack.c.l.b16 %v1814
    %v2619 = vunpack.c.h.b16 %v1814
    %v2620 = vunpack.c.l.b16 %v1815
    %v2621 = vunpack.c.h.b16 %v1815
    %v2622 = vunpack.c.l.b16 %v1816
    %v2623 = vunpack.c.h.b16 %v1816
    %v2624 = vunpack.c.l.b16 %v1817
    %v2625 = vunpack.c.h.b16 %v1817
    %v2626 = vunpack.c.l.b16 %v1818
    %v2627 = vunpack.c.h.b16 %v1818
    %v2628 = vunpack.c.l.b16 %v1819
    %v2629 = vunpack.c.h.b16 %v1819
    %v2630 = vpack.c.b16 %v2126, %v2118
    %v2631 = vpack.c.b16 %v2127, %v2119
    %v2632 = vpack.c.b16 %v2128, %v2120
    %v2633 = vpack.c.b16 %v2129, %v2121
    %v2634 = vpack.c.b16 %v2130, %v2122
    %v2635 = vpack.c.b16 %v2131, %v2123
    %v2636 = vpack.c.b16 %v2132, %v2124
    %v2637 = vpack.c.b16 %v2133, %v2125
    %v2638 = vpack.c.b16 %v2142, %v2134
    %v2639 = vpack.c.b16 %v2143, %v2135
    %v2640 = vpack.c.b16 %v2144, %v2136
    %v2641 = vpack.c.b16 %v2145, %v2137
    %v2642 = vpack.c.b16 %v2146, %v2138
    %v2643 = vpack.c.b16 %v2147, %v2139
    %v2644 = vpack.c.b16 %v2148, %v2140
    %v2645 = vpack.c.b16 %v2149, %v2141
    %v2646 = vpack.c.b16 %v2158, %v2150
    %v2647 = vpack.c.b16 %v2159, %v2151
    %v2648 = vpack.c.b16 %v2160, %v2152
    %v2649 = vpack.c.b16 %v2161, %v2153
    %v2650 = vpack.c.b16 %v2162, %v2154
    %v2651 = vpack.c.b16 %v2163, %v2155
    %v2652 = vpack.c.b16 %v2164, %v2156
    %v2653 = vpack.c.b16 %v2165, %v2157
    %v2654 = vpack.c.b16 %v2174, %v2166
    %v2655 = vpack.c.b16 %v2175, %v2167
    %v2656 = vpack.c.b16 %v2176, %v2168
    %v2657 = vpack.c.b16 %v2177, %v2169
    %v2658 = vpack.c.b16 %v2178, %v2170
    %v2659 = vpack.c.b16 %v2179, %v2171
    %v2660 = vpack.c.b16 %v2180, %v2172
    %v2661 = vpack.c.b16 %v2181, %v2173
    %v2662 = vpack.c.b16 %v2190, %v2182
    %v2663 = vpack.c.b16 %v2191, %v2183
    %v2664 = vpack.c.b16 %v2192, %v2184
    %v2665 = vpack.c.b16 %v2193, %v2185
    %v2666 = vpack.c.b16 %v2194, %v2186
    %v2667 = vpack.c.b16 %v2195, %v2187
    %v2668 = vpack.c.b16 %v2196, %v2188
    %v2669 = vpack.c.b16 %v2197, %v2189
    %v2670 = vpack.c.b16 %v2206, %v2198
    %v2671 = vpack.c.b16 %v2207, %v2199
    %v2672 = vpack.c.b16 %v2208, %v2200
    %v2673 = vpack.c.b16 %v2209, %v2201
    %v2674 = vpack.c.b16 %v2210, %v2202
    %v2675 = vpack.c.b16 %v2211, %v2203
    %v2676 = vpack.c.b16 %v2212, %v2204
    %v2677 = vpack.c.b16 %v2213, %v2205
    %v2678 = vpack.c.b16 %v2222, %v2214
    %v2679 = vpack.c.b16 %v2223, %v2215
    %v2680 = vpack.c.b16 %v2224, %v2216
    %v2681 = vpack.c.b16 %v2225, %v2217
    %v2682 = vpack.c.b16 %v2226, %v2218
    %v2683 = vpack.c.b16 %v2227, %v2219
    %v2684 = vpack.c.b16 %v2228, %v2220
    %v2685 = vpack.c.b16 %v2229, %v2221
    %v2686 = vpack.c.b16 %v2238, %v2230
    %v2687 = vpack.c.b16 %v2239, %v2231
    %v2688 = vpack.c.b16 %v2240, %v2232
    %v2689 = vpack.c.b16 %v2241, %v2233
    %v2690 = vpack.c.b16 %v2242, %v2234
    %v2691 = vpack.c.b16 %v2243, %v2235
    %v2692 = vpack.c.b16 %v2244, %v2236
    %v2693 = vpack.c.b16 %v2245, %v2237
    %v2694 = vpack.c.b16 %v2254, %v2246
    %v2695 = vpack.c.b16 %v2255, %v2247
    %v2696 = vpack.c.b16 %v2256, %v2248
    %v2697 = vpack.c.b16 %v2257, %v2249
    %v2698 = vpack.c.b16 %v2258, %v2250
    %v2699 = vpack.c.b16 %v2259, %v2251
    %v2700 = vpack.c.b16 %v2260, %v2252
    %v2701 = vpack.c.b16 %v2261, %v2253
    %v2702 = vpack.c.b16 %v2270, %v2262
    %v2703 = vpack.c.b16 %v2271, %v2263
    %v2704 = vpack.c.b16 %v2272, %v2264
    %v2705 = vpack.c.b16 %v2273, %v2265
    %v2706 = vpack.c.b16 %v2274, %v2266
    %v2707 = vpack.c.b16 %v2275, %v2267
    %v2708 = vpack.c.b16 %v2276, %v2268
    %v2709 = vpack.c.b16 %v2277, %v2269
    %v2710 = vpack.c.b16 %v2286, %v2278
    %v2711 = vpack.c.b16 %v2287, %v2279
    %v2712 = vpack.c.b16 %v2288, %v2280
    %v2713 = vpack.c.b16 %v2289, %v2281
    %v2714 = vpack.c.b16 %v2290, %v2282
    %v2715 = vpack.c.b16 %v2291, %v2283
    %v2716 = vpack.c.b16 %v2292, %v2284
    %v2717 = vpack.c.b16 %v2293, %v2285
    %v2718 = vpack.c.b16 %v2302, %v2294
    %v2719 = vpack.c.b16 %v2303, %v2295
    %v2720 = vpack.c.b16 %v2304, %v2296
    %v2721 = vpack.c.b16 %v2305, %v2297
    %v2722 = vpack.c.b16 %v2306, %v2298
    %v2723 = vpack.c.b16 %v2307, %v2299
    %v2724 = vpack.c.b16 %v2308, %v2300
    %v2725 = vpack.c.b16 %v2309, %v2301
    %v2726 = vpack.c.b16 %v2318, %v2310
    %v2727 = vpack.c.b16 %v2319, %v2311
    %v2728 = vpack.c.b16 %v2320, %v2312
    %v2729 = vpack.c.b16 %v2321, %v2313
    %v2730 = vpack.c.b16 %v2322, %v2314
    %v2731 = vpack.c.b16 %v2323, %v2315
    %v2732 = vpack.c.b16 %v2324, %v2316
    %v2733 = vpack.c.b16 %v2325, %v2317
    %v2734 = vpack.c.b16 %v2334, %v2326
    %v2735 = vpack.c.b16 %v2335, %v2327
    %v2736 = vpack.c.b16 %v2336, %v2328
    %v2737 = vpack.c.b16 %v2337, %v2329
    %v2738 = vpack.c.b16 %v2338, %v2330
    %v2739 = vpack.c.b16 %v2339, %v2331
    %v2740 = vpack.c.b16 %v2340, %v2332
    %v2741 = vpack.c.b16 %v2341, %v2333
    %v2742 = vpack.c.b16 %v2350, %v2342
    %v2743 = vpack.c.b16 %v2351, %v2343
    %v2744 = vpack.c.b16 %v2352, %v2344
    %v2745 = vpack.c.b16 %v2353, %v2345
    %v2746 = vpack.c.b16 %v2354, %v2346
    %v2747 = vpack.c.b16 %v2355, %v2347
    %v2748 = vpack.c.b16 %v2356, %v2348
    %v2749 = vpack.c.b16 %v2357, %v2349
    %v2750 = vpack.c.b16 %v2366, %v2358
    %v2751 = vpack.c.b16 %v2367, %v2359
    %v2752 = vpack.c.b16 %v2368, %v2360
    %v2753 = vpack.c.b16 %v2369, %v2361
    %v2754 = vpack.c.b16 %v2370, %v2362
    %v2755 = vpack.c.b16 %v2371, %v2363
    %v2756 = vpack.c.b16 %v2372, %v2364
    %v2757 = vpack.c.b16 %v2373, %v2365
    %v2758 = vpack.c.b16 %v2382, %v2374
    %v2759 = vpack.c.b16 %v2383, %v2375
    %v2760 = vpack.c.b16 %v2384, %v2376
    %v2761 = vpack.c.b16 %v2385, %v2377
    %v2762 = vpack.c.b16 %v2386, %v2378
    %v2763 = vpack.c.b16 %v2387, %v2379
    %v2764 = vpack.c.b16 %v2388, %v2380
    %v2765 = vpack.c.b16 %v2389, %v2381
    %v2766 = vpack.c.b16 %v2398, %v2390
    %v2767 = vpack.c.b16 %v2399, %v2391
    %v2768 = vpack.c.b16 %v2400, %v2392
    %v2769 = vpack.c.b16 %v2401, %v2393
    %v2770 = vpack.c.b16 %v2402, %v2394
    %v2771 = vpack.c.b16 %v2403, %v2395
    %v2772 = vpack.c.b16 %v2404, %v2396
    %v2773 = vpack.c.b16 %v2405, %v2397
    %v2774 = vpack.c.b16 %v2414, %v2406
    %v2775 = vpack.c.b16 %v2415, %v2407
    %v2776 = vpack.c.b16 %v2416, %v2408
    %v2777 = vpack.c.b16 %v2417, %v2409
    %v2778 = vpack.c.b16 %v2418, %v2410
    %v2779 = vpack.c.b16 %v2419, %v2411
    %v2780 = vpack.c.b16 %v2420, %v2412
    %v2781 = vpack.c.b16 %v2421, %v2413
    %v2782 = vpack.c.b16 %v2430, %v2422
    %v2783 = vpack.c.b16 %v2431, %v2423
    %v2784 = vpack.c.b16 %v2432, %v2424
    %v2785 = vpack.c.b16 %v2433, %v2425
    %v2786 = vpack.c.b16 %v2434, %v2426
    %v2787 = vpack.c.b16 %v2435, %v2427
    %v2788 = vpack.c.b16 %v2436, %v2428
    %v2789 = vpack.c.b16 %v2437, %v2429
    %v2790 = vpack.c.b16 %v2446, %v2438
    %v2791 = vpack.c.b16 %v2447, %v2439
    %v2792 = vpack.c.b16 %v2448, %v2440
    %v2793 = vpack.c.b16 %v2449, %v2441
    %v2794 = vpack.c.b16 %v2450, %v2442
    %v2795 = vpack.c.b16 %v2451, %v2443
    %v2796 = vpack.c.b16 %v2452, %v2444
    %v2797 = vpack.c.b16 %v2453, %v2445
    %v2798 = vpack.c.b16 %v2462, %v2454
    %v2799 = vpack.c.b16 %v2463, %v2455
    %v2800 = vpack.c.b16 %v2464, %v2456
    %v2801 = vpack.c.b16 %v2465, %v2457
    %v2802 = vpack.c.b16 %v2466, %v2458
    %v2803 = vpack.c.b16 %v2467, %v2459
    %v2804 = vpack.c.b16 %v2468, %v2460
    %v2805 = vpack.c.b16 %v2469, %v2461
    %v2806 = vpack.c.b16 %v2478, %v2470
    %v2807 = vpack.c.b16 %v2479, %v2471
    %v2808 = vpack.c.b16 %v2480, %v2472
    %v2809 = vpack.c.b16 %v2481, %v2473
    %v2810 = vpack.c.b16 %v2482, %v2474
    %v2811 = vpack.c.b16 %v2483, %v2475
    %v2812 = vpack.c.b16 %v2484, %v2476
    %v2813 = vpack.c.b16 %v2485, %v2477
    %v2814 = vpack.c.b16 %v2494, %v2486
    %v2815 = vpack.c.b16 %v2495, %v2487
    %v2816 = vpack.c.b16 %v2496, %v2488
    %v2817 = vpack.c.b16 %v2497, %v2489
    %v2818 = vpack.c.b16 %v2498, %v2490
    %v2819 = vpack.c.b16 %v2499, %v2491
    %v2820 = vpack.c.b16 %v2500, %v2492
    %v2821 = vpack.c.b16 %v2501, %v2493
    %v2822 = vpack.c.b16 %v2510, %v2502
    %v2823 = vpack.c.b16 %v2511, %v2503
    %v2824 = vpack.c.b16 %v2512, %v2504
    %v2825 = vpack.c.b16 %v2513, %v2505
    %v2826 = vpack.c.b16 %v2514, %v2506
    %v2827 = vpack.c.b16 %v2515, %v2507
    %v2828 = vpack.c.b16 %v2516, %v2508
    %v2829 = vpack.c.b16 %v2517, %v2509
    %v2830 = vpack.c.b16 %v2526, %v2518
    %v2831 = vpack.c.b16 %v2527, %v2519
    %v2832 = vpack.c.b16 %v2528, %v2520
    %v2833 = vpack.c.b16 %v2529, %v2521
    %v2834 = vpack.c.b16 %v2530, %v2522
    %v2835 = vpack.c.b16 %v2531, %v2523
    %v2836 = vpack.c.b16 %v2532, %v2524
    %v2837 = vpack.c.b16 %v2533, %v2525
    %v2838 = vpack.c.b16 %v2542, %v2534
    %v2839 = vpack.c.b16 %v2543, %v2535
    %v2840 = vpack.c.b16 %v2544, %v2536
    %v2841 = vpack.c.b16 %v2545, %v2537
    %v2842 = vpack.c.b16 %v2546, %v2538
    %v2843 = vpack.c.b16 %v2547, %v2539
    %v2844 = vpack.c.b16 %v2548, %v2540
    %v2845 = vpack.c.b16 %v2549, %v2541
    %v2846 = vpack.c.b16 %v2558, %v2550
    %v2847 = vpack.c.b16 %v2559, %v2551
    %v2848 = vpack.c.b16 %v2560, %v2552
    %v2849 = vpack.c.b16 %v2561, %v2553
    %v2850 = vpack.c.b16 %v2562, %v2554
    %v2851 = vpack.c.b16 %v2563, %v2555
    %v2852 = vpack.c.b16 %v2564, %v2556
    %v2853 = vpack.c.b16 %v2565, %v2557
    %v2854 = vpack.c.b16 %v2574, %v2566
    %v2855 = vpack.c.b16 %v2575, %v2567
    %v2856 = vpack.c.b16 %v2576, %v2568
    %v2857 = vpack.c.b16 %v2577, %v2569
    %v2858 = vpack.c.b16 %v2578, %v2570
    %v2859 = vpack.c.b16 %v2579, %v2571
    %v2860 = vpack.c.b16 %v2580, %v2572
    %v2861 = vpack.c.b16 %v2581, %v2573
    %v2862 = vpack.c.b16 %v2590, %v2582
    %v2863 = vpack.c.b16 %v2591, %v2583
    %v2864 = vpack.c.b16 %v2592, %v2584
    %v2865 = vpack.c.b16 %v2593, %v2585
    %v2866 = vpack.c.b16 %v2594, %v2586
    %v2867 = vpack.c.b16 %v2595, %v2587
    %v2868 = vpack.c.b16 %v2596, %v2588
    %v2869 = vpack.c.b16 %v2597, %v2589
    %v2870 = vpack.c.b16 %v2606, %v2598
    %v2871 = vpack.c.b16 %v2607, %v2599
    %v2872 = vpack.c.b16 %v2608, %v2600
    %v2873 = vpack.c.b16 %v2609, %v2601
    %v2874 = vpack.c.b16 %v2610, %v2602
    %v2875 = vpack.c.b16 %v2611, %v2603
    %v2876 = vpack.c.b16 %v2612, %v2604
    %v2877 = vpack.c.b16 %v2613, %v2605
    %v2878 = vpack.c.b16 %v2622, %v2614
    %v2879 = vpack.c.b16 %v2623, %v2615
    %v2880 = vpack.c.b16 %v2624, %v2616
    %v2881 = vpack.c.b16 %v2625, %v2617
    %v2882 = vpack.c.b16 %v2626, %v2618
    %v2883 = vpack.c.b16 %v2627, %v2619
    %v2884 = vpack.c.b16 %v2628, %v2620
    %v2885 = vpack.c.b16 %v2629, %v2621
    %3142 = vmatprep.subr.bf16.mxu0 %v2631
    %3143 = vmatpush1.bf16.msra.mxu0 %v2630
    %3144 = vmatprep.subr.bf16.mxu0 %v2639
    %3145 = vmatpush1.bf16.msra.mxu0 %v2638
    %3146 = vmatprep.subr.bf16.mxu0 %v2647
    %3147 = vmatpush1.bf16.msra.mxu0 %v2646
    %3148 = vmatprep.subr.bf16.mxu0 %v2655
    %3149 = vmatpush1.bf16.msra.mxu0 %v2654
    %3150 = vmatprep.subr.bf16.mxu0 %v2663
    %3151 = vmatpush1.bf16.msra.mxu0 %v2662
    %3152 = vmatprep.subr.bf16.mxu0 %v2671
    %3153 = vmatpush1.bf16.msra.mxu0 %v2670
    %3154 = vmatprep.subr.bf16.mxu0 %v2679
    %3155 = vmatpush1.bf16.msra.mxu0 %v2678
    %3156 = vmatprep.subr.bf16.mxu0 %v2687
    %3157 = vmatpush1.bf16.msra.mxu0 %v2686
    %3158 = vmatprep.subr.bf16.mxu0 %v2695
    %3159 = vmatpush1.bf16.msra.mxu0 %v2694
    %3160 = vmatprep.subr.bf16.mxu0 %v2703
    %3161 = vmatpush1.bf16.msra.mxu0 %v2702
    %3162 = vmatprep.subr.bf16.mxu0 %v2711
    %3163 = vmatpush1.bf16.msra.mxu0 %v2710
    %3164 = vmatprep.subr.bf16.mxu0 %v2719
    %3165 = vmatpush1.bf16.msra.mxu0 %v2718
    %3166 = vmatprep.subr.bf16.mxu0 %v2727
    %3167 = vmatpush1.bf16.msra.mxu0 %v2726
    %3168 = vmatprep.subr.bf16.mxu0 %v2735
    %3169 = vmatpush1.bf16.msra.mxu0 %v2734
    %3170 = vmatprep.subr.bf16.mxu0 %v2743
    %3171 = vmatpush1.bf16.msra.mxu0 %v2742
    %3172 = vmatprep.subr.bf16.mxu0 %v2751
    %3173 = vmatpush1.bf16.msra.mxu0 %v2750
    %3174 = vmatprep.mubr.bf16.mxu0 %v1561
    %3175 = vmatmul.mubr.bf16.gmra.mrb[0].mxu0 %v1560
    %v3176 = vpop.f32.mrb[0].mxu0
    %v3177 = vadd.f32 %v1825, %v3176
    %v3178 = vpop.f32.mrb[0].mxu0
    %v3179 = vadd.f32 %v1829, %v3178
    %v3180 = vpop.f32.mrb[0].mxu0
    %v3181 = vpop.f32.mrb[0].mxu0
    %3182 = vdwg.mxu0
    %3183 = vmatprep.subr.bf16.mxu0 %v2759
    %3184 = vmatpush1.bf16.msra.mxu0 %v2758
    %3185 = vmatprep.subr.bf16.mxu0 %v2767
    %3186 = vmatpush1.bf16.msra.mxu0 %v2766
    %3187 = vmatprep.subr.bf16.mxu0 %v2775
    %3188 = vmatpush1.bf16.msra.mxu0 %v2774
    %3189 = vmatprep.subr.bf16.mxu0 %v2783
    %3190 = vmatpush1.bf16.msra.mxu0 %v2782
    %3191 = vmatprep.subr.bf16.mxu0 %v2791
    %3192 = vmatpush1.bf16.msra.mxu0 %v2790
    %3193 = vmatprep.subr.bf16.mxu0 %v2799
    %3194 = vmatpush1.bf16.msra.mxu0 %v2798
    %3195 = vmatprep.subr.bf16.mxu0 %v2807
    %3196 = vmatpush1.bf16.msra.mxu0 %v2806
    %3197 = vmatprep.subr.bf16.mxu0 %v2815
    %3198 = vmatpush1.bf16.msra.mxu0 %v2814
    %3199 = vmatprep.subr.bf16.mxu0 %v2823
    %3200 = vmatpush1.bf16.msra.mxu0 %v2822
    %3201 = vmatprep.subr.bf16.mxu0 %v2831
    %3202 = vmatpush1.bf16.msra.mxu0 %v2830
    %3203 = vmatprep.subr.bf16.mxu0 %v2839
    %3204 = vmatpush1.bf16.msra.mxu0 %v2838
    %3205 = vmatprep.subr.bf16.mxu0 %v2847
    %3206 = vmatpush1.bf16.msra.mxu0 %v2846
    %3207 = vmatprep.subr.bf16.mxu0 %v2855
    %3208 = vmatpush1.bf16.msra.mxu0 %v2854
    %3209 = vmatprep.subr.bf16.mxu0 %v2863
    %3210 = vmatpush1.bf16.msra.mxu0 %v2862
    %3211 = vmatprep.subr.bf16.mxu0 %v2871
    %3212 = vmatpush1.bf16.msra.mxu0 %v2870
    %3213 = vmatprep.subr.bf16.mxu0 %v2879
    %3214 = vmatpush1.bf16.msra.mxu0 %v2878
    %3215 = vmatprep.mubr.bf16.mxu0 %v1563
    %3216 = vmatmul.mubr.bf16.gmra.mrb[0].mxu0 %v1562
    %v3217 = vpop.f32.mrb[0].mxu0
    %v3218 = vadd.f32 %v3177, %v3217
    %v3219 = vpop.f32.mrb[0].mxu0
    %v3220 = vadd.f32 %v3179, %v3219
    %v3221 = vpop.f32.mrb[0].mxu0
    %v3222 = vpop.f32.mrb[0].mxu0
    %3223 = vdwg.mxu0
    %3224 = vmatprep.subr.bf16.mxu0 %v2633
    %3225 = vmatpush1.bf16.msra.mxu0 %v2632
    %3226 = vmatprep.subr.bf16.mxu0 %v2641
    %3227 = vmatpush1.bf16.msra.mxu0 %v2640
    %3228 = vmatprep.subr.bf16.mxu0 %v2649
    %3229 = vmatpush1.bf16.msra.mxu0 %v2648
    %3230 = vmatprep.subr.bf16.mxu0 %v2657
    %3231 = vmatpush1.bf16.msra.mxu0 %v2656
    %3232 = vmatprep.subr.bf16.mxu0 %v2665
    %3233 = vmatpush1.bf16.msra.mxu0 %v2664
    %3234 = vmatprep.subr.bf16.mxu0 %v2673
    %3235 = vmatpush1.bf16.msra.mxu0 %v2672
    %3236 = vmatprep.subr.bf16.mxu0 %v2681
    %3237 = vmatpush1.bf16.msra.mxu0 %v2680
    %3238 = vmatprep.subr.bf16.mxu0 %v2689
    %3239 = vmatpush1.bf16.msra.mxu0 %v2688
    %3240 = vmatprep.subr.bf16.mxu0 %v2697
    %3241 = vmatpush1.bf16.msra.mxu0 %v2696
    %3242 = vmatprep.subr.bf16.mxu0 %v2705
    %3243 = vmatpush1.bf16.msra.mxu0 %v2704
    %3244 = vmatprep.subr.bf16.mxu0 %v2713
    %3245 = vmatpush1.bf16.msra.mxu0 %v2712
    %3246 = vmatprep.subr.bf16.mxu0 %v2721
    %3247 = vmatpush1.bf16.msra.mxu0 %v2720
    %3248 = vmatprep.subr.bf16.mxu0 %v2729
    %3249 = vmatpush1.bf16.msra.mxu0 %v2728
    %3250 = vmatprep.subr.bf16.mxu0 %v2737
    %3251 = vmatpush1.bf16.msra.mxu0 %v2736
    %3252 = vmatprep.subr.bf16.mxu0 %v2745
    %3253 = vmatpush1.bf16.msra.mxu0 %v2744
    %3254 = vmatprep.subr.bf16.mxu0 %v2753
    %3255 = vmatpush1.bf16.msra.mxu0 %v2752
    %3256 = vmatprep.mubr.bf16.mxu0 %v1561
    %3257 = vmatmul.mubr.bf16.gmra.mrb[0].mxu0 %v1560
    %v3258 = vpop.f32.mrb[0].mxu0
    %v3259 = vadd.f32 %v1833, %v3258
    %v3260 = vpop.f32.mrb[0].mxu0
    %v3261 = vadd.f32 %v1837, %v3260
    %v3262 = vpop.f32.mrb[0].mxu0
    %v3263 = vpop.f32.mrb[0].mxu0
    %3264 = vdwg.mxu0
    %3265 = vmatprep.subr.bf16.mxu0 %v2761
    %3266 = vmatpush1.bf16.msra.mxu0 %v2760
    %3267 = vmatprep.subr.bf16.mxu0 %v2769
    %3268 = vmatpush1.bf16.msra.mxu0 %v2768
    %3269 = vmatprep.subr.bf16.mxu0 %v2777
    %3270 = vmatpush1.bf16.msra.mxu0 %v2776
    %3271 = vmatprep.subr.bf16.mxu0 %v2785
    %3272 = vmatpush1.bf16.msra.mxu0 %v2784
    %3273 = vmatprep.subr.bf16.mxu0 %v2793
    %3274 = vmatpush1.bf16.msra.mxu0 %v2792
    %3275 = vmatprep.subr.bf16.mxu0 %v2801
    %3276 = vmatpush1.bf16.msra.mxu0 %v2800
    %3277 = vmatprep.subr.bf16.mxu0 %v2809
    %3278 = vmatpush1.bf16.msra.mxu0 %v2808
    %3279 = vmatprep.subr.bf16.mxu0 %v2817
    %3280 = vmatpush1.bf16.msra.mxu0 %v2816
    %3281 = vmatprep.subr.bf16.mxu0 %v2825
    %3282 = vmatpush1.bf16.msra.mxu0 %v2824
    %3283 = vmatprep.subr.bf16.mxu0 %v2833
    %3284 = vmatpush1.bf16.msra.mxu0 %v2832
    %3285 = vmatprep.subr.bf16.mxu0 %v2841
    %3286 = vmatpush1.bf16.msra.mxu0 %v2840
    %3287 = vmatprep.subr.bf16.mxu0 %v2849
    %3288 = vmatpush1.bf16.msra.mxu0 %v2848
    %3289 = vmatprep.subr.bf16.mxu0 %v2857
    %3290 = vmatpush1.bf16.msra.mxu0 %v2856
    %3291 = vmatprep.subr.bf16.mxu0 %v2865
    %3292 = vmatpush1.bf16.msra.mxu0 %v2864
    %3293 = vmatprep.subr.bf16.mxu0 %v2873
    %3294 = vmatpush1.bf16.msra.mxu0 %v2872
    %3295 = vmatprep.subr.bf16.mxu0 %v2881
    %3296 = vmatpush1.bf16.msra.mxu0 %v2880
    %3297 = vmatprep.mubr.bf16.mxu0 %v1563
    %3298 = vmatmul.mubr.bf16.gmra.mrb[0].mxu0 %v1562
    %v3299 = vpop.f32.mrb[0].mxu0
    %v3300 = vadd.f32 %v3259, %v3299
    %v3301 = vpop.f32.mrb[0].mxu0
    %v3302 = vadd.f32 %v3261, %v3301
    %v3303 = vpop.f32.mrb[0].mxu0
    %v3304 = vpop.f32.mrb[0].mxu0
    %3305 = vdwg.mxu0
    %3306 = vmatprep.subr.bf16.mxu0 %v2635
    %3307 = vmatpush1.bf16.msra.mxu0 %v2634
    %3308 = vmatprep.subr.bf16.mxu0 %v2643
    %3309 = vmatpush1.bf16.msra.mxu0 %v2642
    %3310 = vmatprep.subr.bf16.mxu0 %v2651
    %3311 = vmatpush1.bf16.msra.mxu0 %v2650
    %3312 = vmatprep.subr.bf16.mxu0 %v2659
    %3313 = vmatpush1.bf16.msra.mxu0 %v2658
    %3314 = vmatprep.subr.bf16.mxu0 %v2667
    %3315 = vmatpush1.bf16.msra.mxu0 %v2666
    %3316 = vmatprep.subr.bf16.mxu0 %v2675
    %3317 = vmatpush1.bf16.msra.mxu0 %v2674
    %3318 = vmatprep.subr.bf16.mxu0 %v2683
    %3319 = vmatpush1.bf16.msra.mxu0 %v2682
    %3320 = vmatprep.subr.bf16.mxu0 %v2691
    %3321 = vmatpush1.bf16.msra.mxu0 %v2690
    %3322 = vmatprep.subr.bf16.mxu0 %v2699
    %3323 = vmatpush1.bf16.msra.mxu0 %v2698
    %3324 = vmatprep.subr.bf16.mxu0 %v2707
    %3325 = vmatpush1.bf16.msra.mxu0 %v2706
    %3326 = vmatprep.subr.bf16.mxu0 %v2715
    %3327 = vmatpush1.bf16.msra.mxu0 %v2714
    %3328 = vmatprep.subr.bf16.mxu0 %v2723
    %3329 = vmatpush1.bf16.msra.mxu0 %v2722
    %3330 = vmatprep.subr.bf16.mxu0 %v2731
    %3331 = vmatpush1.bf16.msra.mxu0 %v2730
    %3332 = vmatprep.subr.bf16.mxu0 %v2739
    %3333 = vmatpush1.bf16.msra.mxu0 %v2738
    %3334 = vmatprep.subr.bf16.mxu0 %v2747
    %3335 = vmatpush1.bf16.msra.mxu0 %v2746
    %3336 = vmatprep.subr.bf16.mxu0 %v2755
    %3337 = vmatpush1.bf16.msra.mxu0 %v2754
    %3338 = vmatprep.mubr.bf16.mxu0 %v1561
    %3339 = vmatmul.mubr.bf16.gmra.mrb[0].mxu0 %v1560
    %v3340 = vpop.f32.mrb[0].mxu0
    %v3341 = vadd.f32 %v1841, %v3340
    %v3342 = vpop.f32.mrb[0].mxu0
    %v3343 = vadd.f32 %v1845, %v3342
    %v3344 = vpop.f32.mrb[0].mxu0
    %v3345 = vpop.f32.mrb[0].mxu0
    %3346 = vdwg.mxu0
    %3347 = vmatprep.subr.bf16.mxu0 %v2763
    %3348 = vmatpush1.bf16.msra.mxu0 %v2762
    %3349 = vmatprep.subr.bf16.mxu0 %v2771
    %3350 = vmatpush1.bf16.msra.mxu0 %v2770
    %3351 = vmatprep.subr.bf16.mxu0 %v2779
    %3352 = vmatpush1.bf16.msra.mxu0 %v2778
    %3353 = vmatprep.subr.bf16.mxu0 %v2787
    %3354 = vmatpush1.bf16.msra.mxu0 %v2786
    %3355 = vmatprep.subr.bf16.mxu0 %v2795
    %3356 = vmatpush1.bf16.msra.mxu0 %v2794
    %3357 = vmatprep.subr.bf16.mxu0 %v2803
    %3358 = vmatpush1.bf16.msra.mxu0 %v2802
    %3359 = vmatprep.subr.bf16.mxu0 %v2811
    %3360 = vmatpush1.bf16.msra.mxu0 %v2810
    %3361 = vmatprep.subr.bf16.mxu0 %v2819
    %3362 = vmatpush1.bf16.msra.mxu0 %v2818
    %3363 = vmatprep.subr.bf16.mxu0 %v2827
    %3364 = vmatpush1.bf16.msra.mxu0 %v2826
    %3365 = vmatprep.subr.bf16.mxu0 %v2835
    %3366 = vmatpush1.bf16.msra.mxu0 %v2834
    %3367 = vmatprep.subr.bf16.mxu0 %v2843
    %3368 = vmatpush1.bf16.msra.mxu0 %v2842
    %3369 = vmatprep.subr.bf16.mxu0 %v2851
    %3370 = vmatpush1.bf16.msra.mxu0 %v2850
    %3371 = vmatprep.subr.bf16.mxu0 %v2859
    %3372 = vmatpush1.bf16.msra.mxu0 %v2858
    %3373 = vmatprep.subr.bf16.mxu0 %v2867
    %3374 = vmatpush1.bf16.msra.mxu0 %v2866
    %3375 = vmatprep.subr.bf16.mxu0 %v2875
    %3376 = vmatpush1.bf16.msra.mxu0 %v2874
    %3377 = vmatprep.subr.bf16.mxu0 %v2883
    %3378 = vmatpush1.bf16.msra.mxu0 %v2882
    %3379 = vmatprep.mubr.bf16.mxu0 %v1563
    %3380 = vmatmul.mubr.bf16.gmra.mrb[0].mxu0 %v1562
    %v3381 = vpop.f32.mrb[0].mxu0
    %v3382 = vadd.f32 %v3341, %v3381
    %v3383 = vpop.f32.mrb[0].mxu0
    %v3384 = vadd.f32 %v3343, %v3383
    %v3385 = vpop.f32.mrb[0].mxu0
    %v3386 = vpop.f32.mrb[0].mxu0
    %3387 = vdwg.mxu0
    %3388 = vmatprep.subr.bf16.mxu0 %v2637
    %3389 = vmatpush1.bf16.msra.mxu0 %v2636
    %3390 = vmatprep.subr.bf16.mxu0 %v2645
    %3391 = vmatpush1.bf16.msra.mxu0 %v2644
    %3392 = vmatprep.subr.bf16.mxu0 %v2653
    %3393 = vmatpush1.bf16.msra.mxu0 %v2652
    %3394 = vmatprep.subr.bf16.mxu0 %v2661
    %3395 = vmatpush1.bf16.msra.mxu0 %v2660
    %3396 = vmatprep.subr.bf16.mxu0 %v2669
    %3397 = vmatpush1.bf16.msra.mxu0 %v2668
    %3398 = vmatprep.subr.bf16.mxu0 %v2677
    %3399 = vmatpush1.bf16.msra.mxu0 %v2676
    %3400 = vmatprep.subr.bf16.mxu0 %v2685
    %3401 = vmatpush1.bf16.msra.mxu0 %v2684
    %3402 = vmatprep.subr.bf16.mxu0 %v2693
    %3403 = vmatpush1.bf16.msra.mxu0 %v2692
    %3404 = vmatprep.subr.bf16.mxu0 %v2701
    %3405 = vmatpush1.bf16.msra.mxu0 %v2700
    %3406 = vmatprep.subr.bf16.mxu0 %v2709
    %3407 = vmatpush1.bf16.msra.mxu0 %v2708
    %3408 = vmatprep.subr.bf16.mxu0 %v2717
    %3409 = vmatpush1.bf16.msra.mxu0 %v2716
    %3410 = vmatprep.subr.bf16.mxu0 %v2725
    %3411 = vmatpush1.bf16.msra.mxu0 %v2724
    %3412 = vmatprep.subr.bf16.mxu0 %v2733
    %3413 = vmatpush1.bf16.msra.mxu0 %v2732
    %3414 = vmatprep.subr.bf16.mxu0 %v2741
    %3415 = vmatpush1.bf16.msra.mxu0 %v2740
    %3416 = vmatprep.subr.bf16.mxu0 %v2749
    %3417 = vmatpush1.bf16.msra.mxu0 %v2748
    %3418 = vmatprep.subr.bf16.mxu0 %v2757
    %3419 = vmatpush1.bf16.msra.mxu0 %v2756
    %3420 = vmatprep.mubr.bf16.mxu0 %v1561
    %3421 = vmatmul.mubr.bf16.gmra.mrb[0].mxu0 %v1560
    %v3422 = vpop.f32.mrb[0].mxu0
    %v3423 = vadd.f32 %v1849, %v3422
    %v3424 = vpop.f32.mrb[0].mxu0
    %v3425 = vadd.f32 %v1853, %v3424
    %v3426 = vpop.f32.mrb[0].mxu0
    %v3427 = vpop.f32.mrb[0].mxu0
    %3428 = vdwg.mxu0
    %3429 = vmatprep.subr.bf16.mxu0 %v2765
    %3430 = vmatpush1.bf16.msra.mxu0 %v2764
    %3431 = vmatprep.subr.bf16.mxu0 %v2773
    %3432 = vmatpush1.bf16.msra.mxu0 %v2772
    %3433 = vmatprep.subr.bf16.mxu0 %v2781
    %3434 = vmatpush1.bf16.msra.mxu0 %v2780
    %3435 = vmatprep.subr.bf16.mxu0 %v2789
    %3436 = vmatpush1.bf16.msra.mxu0 %v2788
    %3437 = vmatprep.subr.bf16.mxu0 %v2797
    %3438 = vmatpush1.bf16.msra.mxu0 %v2796
    %3439 = vmatprep.subr.bf16.mxu0 %v2805
    %3440 = vmatpush1.bf16.msra.mxu0 %v2804
    %3441 = vmatprep.subr.bf16.mxu0 %v2813
    %3442 = vmatpush1.bf16.msra.mxu0 %v2812
    %3443 = vmatprep.subr.bf16.mxu0 %v2821
    %3444 = vmatpush1.bf16.msra.mxu0 %v2820
    %3445 = vmatprep.subr.bf16.mxu0 %v2829
    %3446 = vmatpush1.bf16.msra.mxu0 %v2828
    %3447 = vmatprep.subr.bf16.mxu0 %v2837
    %3448 = vmatpush1.bf16.msra.mxu0 %v2836
    %3449 = vmatprep.subr.bf16.mxu0 %v2845
    %3450 = vmatpush1.bf16.msra.mxu0 %v2844
    %3451 = vmatprep.subr.bf16.mxu0 %v2853
    %3452 = vmatpush1.bf16.msra.mxu0 %v2852
    %3453 = vmatprep.subr.bf16.mxu0 %v2861
    %3454 = vmatpush1.bf16.msra.mxu0 %v2860
    %3455 = vmatprep.subr.bf16.mxu0 %v2869
    %3456 = vmatpush1.bf16.msra.mxu0 %v2868
    %3457 = vmatprep.subr.bf16.mxu0 %v2877
    %3458 = vmatpush1.bf16.msra.mxu0 %v2876
    %3459 = vmatprep.subr.bf16.mxu0 %v2885
    %3460 = vmatpush1.bf16.msra.mxu0 %v2884
    %3461 = vmatprep.mubr.bf16.mxu0 %v1563
    %3462 = vmatmul.mubr.bf16.gmra.mrb[0].mxu0 %v1562
    %v3463 = vpop.f32.mrb[0].mxu0
    %v3464 = vadd.f32 %v3423, %v3463
    %v3465 = vpop.f32.mrb[0].mxu0
    %v3466 = vadd.f32 %v3425, %v3465
    %v3467 = vpop.f32.mrb[0].mxu0
    %v3468 = vpop.f32.mrb[0].mxu0
    %3469 = vdwg.mxu0
    %v3470 = vmul.f32 %v3218, 0.2
    %v3471 = vmul.f32 %v3220, 0.2
    %v3472 = vmul.f32 %v3300, 0.2
    %v3473 = vmul.f32 %v3302, 0.2
    %v3474 = vmul.f32 %v3382, 0.2
    %v3475 = vmul.f32 %v3384, 0.2
    %v3476 = vmul.f32 %v3464, 0.2
    %v3477 = vmul.f32 %v3466, 0.2
    %v3478 = vmax.f32 %v3218, %v3470
    %v3479 = vmax.f32 %v3220, %v3471
    %v3480 = vmax.f32 %v3300, %v3472
    %v3481 = vmax.f32 %v3302, %v3473
    %v3482 = vmax.f32 %v3382, %v3474
    %v3483 = vmax.f32 %v3384, %v3475
    %v3484 = vmax.f32 %v3464, %v3476
    %v3485 = vmax.f32 %v3466, %v3477
    %v3486 = vld [vmem:[%s7] sm:$0xff]
    %v3488 = vlaneseq
    %v3489 = vshrl.u32 %v3488, 7
    %v3490 = vsub.s32 0, %v3489
    %v3491 = vrot.slane %v3486, %v3490
    %v3492 = vlaneseq
    %v3493 = vshrl.u32 %v3492, 7
    %v3494 = vsub.s32 1, %v3493
    %v3495 = vrot.slane %v3486, %v3494
    %v3496 = vlaneseq
    %v3497 = vshrl.u32 %v3496, 7
    %v3498 = vsub.s32 2, %v3497
    %v3499 = vrot.slane %v3486, %v3498
    %v3500 = vlaneseq
    %v3501 = vshrl.u32 %v3500, 7
    %v3502 = vsub.s32 3, %v3501
    %v3503 = vrot.slane %v3486, %v3502
    %v3504 = vlaneseq
    %v3505 = vshrl.u32 %v3504, 7
    %v3506 = vsub.s32 4, %v3505
    %v3507 = vrot.slane %v3486, %v3506
    %v3508 = vlaneseq
    %v3509 = vshrl.u32 %v3508, 7
    %v3510 = vsub.s32 5, %v3509
    %v3511 = vrot.slane %v3486, %v3510
    %v3512 = vlaneseq
    %v3513 = vshrl.u32 %v3512, 7
    %v3514 = vsub.s32 6, %v3513
    %v3515 = vrot.slane %v3486, %v3514
    %v3516 = vlaneseq
    %v3517 = vshrl.u32 %v3516, 7
    %v3518 = vsub.s32 7, %v3517
    %v3519 = vrot.slane %v3486, %v3518
    %v3528 = vmul.f32 %v3478, %v3491
    %v3529 = vmul.f32 %v3479, %v3495
    %v3530 = vmul.f32 %v3480, %v3499
    %v3531 = vmul.f32 %v3481, %v3503
    %v3532 = vmul.f32 %v3482, %v3507
    %v3533 = vmul.f32 %v3483, %v3511
    %v3534 = vmul.f32 %v3484, %v3515
    %v3535 = vmul.f32 %v3485, %v3519
    %v3536 = vadd.f32 %v3528, %v3529
    %v3537 = vadd.f32 %v3536, %v3530
    %v3538 = vadd.f32 %v3537, %v3531
    %v3539 = vadd.f32 %v3538, %v3532
    %v3540 = vadd.f32 %v3539, %v3533
    %v3541 = vadd.f32 %v3540, %v3534
    %v3542 = vadd.f32 %v3541, %v3535
    %3543 = vadd.xlane.f32.xlu0 %v3542
    %v3544 = vpop.xlane.xlu0 %3543
    %v3545 = vld [vmem:[#allocation2] sm:$0x1]
    %v3547 = vlaneseq
    %v3548 = vshrl.u32 %v3547, 7
    %v3549 = vsub.s32 0, %v3548
    %v3550 = vrot.slane %v3545, %v3549
    %v3552 = vadd.f32 %v3544, %v3550
    %v3553 = vsub.f32 0.0, %v3552
    %v3554 = vmul.f32 %v3553, 1.442695
    %v3555 = vpow.pop %v3554
    %v3556 = vadd.f32 %v3555, 1.0
    %v3557 = vrcp.pop %v3556
    %vm3558 = vcmask 7168
    %3559 = vst.msk [vmem:[%s9] sm:$0xff] %vm3558, %v3557
    // Predicated region
    $region58: #{tpu_custom_call.1} parent=1 // pred_check
      _
    $region59: #{tpu_custom_call.1} parent=1 // pred_check_branch
      %3561 = sbr.rel (0) target = $region61
    $region60: #{tpu_custom_call.1} parent=1 // pred_region
      _
    $region61: #{tpu_custom_call.1} parent=1 // pred_fallthru
      _
    // Predicated region
    $region62: #{tpu_custom_call.1} parent=1 // pred_check
      _
    $region63: #{tpu_custom_call.1} parent=1 // pred_check_branch
      %3563 = sbr.rel (0) target = $region65
    $region64: #{tpu_custom_call.1} parent=1 // pred_region
      _
    $region65: #{tpu_custom_call.1} parent=1 // pred_fallthru
      _
    %3564 = vsyncpa [#allocation4], 1
    %3565 = vsyncpa [#allocation6], 1
    %3566 = vsyncpa [#allocation9], 1

</llo_original>
